<compile_context>
chip_gen: v7x
topology: tpu7x:2x2x1
jax: 0.10.0
libtpu: 0.0.40
codegen_flags: <defaults>
</compile_context>

<pallas_src>
import functools
import math

import jax
import jax.numpy as jnp
from jax import lax
from jax.experimental import pallas as pl
from jax.experimental.pallas import tpu as pltpu


# --------------------------- host-side helpers -------------------------------
def _normalized_coords(height, width):
    """Matches PosEncCrossAttn.get_normalized_coordinates (row-major flatten)."""
    y = jnp.linspace(0.0, 1.0, height, dtype=jnp.float32)
    x = jnp.linspace(0.0, 1.0, width, dtype=jnp.float32)
    yg, xg = jnp.meshgrid(y, x, indexing="ij")
    return xg.reshape(-1), yg.reshape(-1)


def _pos_enc(xs, ys, dim):
    """CoordinatePositionalEncoding for one grid: (P,) x, (P,) y -> (P, dim)."""
    half = jnp.exp(jnp.arange(0, dim, 2, dtype=jnp.float32)
                   * (-math.log(10000.0) / dim))[None, :]
    pe = jnp.stack([jnp.sin(xs[:, None] * half),
                    jnp.cos(ys[:, None] * half)], axis=-1)
    return pe.reshape(xs.shape[0], dim)


# --------------------------------- kernel ------------------------------------
def _fused_kernel(local_ref, global_ref, pe_l_ref, pe_g_ref,
                  qw_ref, qb_ref, kw_ref, kb_ref, vw_ref, vb_ref,
                  ow_ref, ob_ref, o_ref, o_sc, *, num_heads, dim_head):
    f32 = jnp.float32
    lf = local_ref[0] + pe_l_ref[...]            # (tq, d) local tile + PE
    gf = global_ref[0] + pe_g_ref[...]           # (L,  d) pooled global + PE

    q = jnp.dot(lf, qw_ref[...], preferred_element_type=f32) + qb_ref[...]
    k = jnp.dot(gf, kw_ref[...], preferred_element_type=f32) + kb_ref[...]
    v = jnp.dot(gf, vw_ref[...], preferred_element_type=f32) + vb_ref[...]

    scale = 1.0 / math.sqrt(dim_head)
    contract_last = (((1,), (1,)), ((), ()))     # 'qd,kd->qk' — no K transpose
    # TODO(synk): convert to lax.fori_loop + pl.ds slices (and pack several
    # heads per matmul) once num_heads / dim_head reach production sizes.
    for h in range(num_heads):                   # static unroll over heads
        lo, hi = h * dim_head, (h + 1) * dim_head
        s = lax.dot_general(q[:, lo:hi], k[:, lo:hi], contract_last,
                            preferred_element_type=f32) * scale      # (tq, L)
        s = s - jnp.max(s, axis=-1, keepdims=True)
        p = jnp.exp(s)
        denom = jnp.sum(p, axis=-1, keepdims=True)
        oh = jnp.dot(p, v[:, lo:hi], preferred_element_type=f32)      # (tq, dh)
        # Fold the softmax normalization into the tiny per-head output
        # (EUP reciprocal + VPU multiply instead of a (tq, L) divide).
        o_sc[:, lo:hi] = oh * pl.reciprocal(denom, approx=True)

    # Single full-depth out-projection: (lf + o_all) @ ow + ob
    out = jnp.dot(lf + o_sc[...], ow_ref[...],
                  preferred_element_type=f32) + ob_ref[...]
    # TODO(synk): if the real model keeps d < 128, restructure the output
    # layout (fold query rows into lanes) to avoid masked partial stores.
    o_ref[0] = out.astype(o_ref.dtype)


# -------------------------------- wrapper ------------------------------------
def pos_enc_cross_attn(local_feat, global_feat, params, num_heads):
    """local_feat: (n, N_p, d); global_feat: (n, d, H0, W0) -> (n, N_p, d)."""
    n, N_p, d = local_feat.shape
    nb, d_g, H0, W0 = global_feat.shape
    assert nb == n and d_g == d
    assert d % num_heads == 0 and d % 2 == 0
    assert H0 % 4 == 0 and W0 % 4 == 0

    # ---- AdaptiveAvgPool2d((H0//4, W0//4)) + flatten/transpose (XLA side) ----
    H, W = H0 // 4, W0 // 4
    L = H * W
    gp = global_feat.reshape(n, d, H, 4, W, 4).mean(axis=(3, 5))
    global_flat = jnp.transpose(gp.reshape(n, d, L), (0, 2, 1))       # (n, L, d)

    # ---- positional encodings computed once per launch (VMEM-resident) ------
    P_h = P_w = int(math.sqrt(N_p))
    assert P_h * P_w == N_p
    xl, yl = _normalized_coords(P_h, P_w)
    xg, yg = _normalized_coords(H, W)
    pe_local = _pos_enc(xl, yl, d)                                    # (N_p, d)
    pe_global = _pos_enc(xg, yg, d)                                   # (L, d)

    # ---- flash-style query-axis tiling ---------------------------------------
    tq = N_p
    for cand in (512, 256, 128):                 # largest tile that divides N_p
        if N_p > cand and N_p % cand == 0:
            tq = cand
            break
    nq = N_p // tq

    dim_head = d // num_heads
    kernel = functools.partial(_fused_kernel, num_heads=num_heads,
                               dim_head=dim_head)

    batch_q = lambda b, q: (b, q, 0)             # follows batch + query tile
    gmap = lambda b, q: (b, 0, 0)                # follows batch only
    pelmap = lambda b, q: (q, 0)                 # follows query tile only
    const2 = lambda b, q: (0, 0)                 # constant across the grid
    single = pl.Buffered(buffer_count=1)         # constants: DMA once, 1 buffer

    # ---- VMEM budget (per grid step, f32 bytes) ------------------------------
    per_step = 4 * (
        4 * d * d + 4 * d                        # weights + biases (1 buffer)
        + L * d                                  # pe_global (1 buffer)
        + 2 * tq * d                             # pe_local (2 buffers)
        + 2 * (tq * d + L * d + tq * d)          # local/global/out tiles (2 bufs)
        + tq * d                                 # o_all scratch
        + 4 * tq * d + 2 * L * d + 2 * tq * L)   # q/k/v/lf/gf/score live values
    # TODO(synk): on v7x (64 MiB physical VMEM) shrink tq rather than raising
    # the limit; on v5e/v6e grow tq toward ~100 MiB working sets.
    vmem_limit = int(min(max(2 * per_step, 32 * 1024 * 1024), 96 * 1024 * 1024))

    return pl.pallas_call(
        kernel,
        out_shape=jax.ShapeDtypeStruct((n, N_p, d), local_feat.dtype),
        grid_spec=pltpu.PrefetchScalarGridSpec(
            num_scalar_prefetch=0,
            grid=(n, nq),
            in_specs=[
                pl.BlockSpec((1, tq, d), batch_q),                    # local tile
                pl.BlockSpec((1, L, d), gmap),                        # global feat
                pl.BlockSpec((tq, d), pelmap),                        # pe_local
                pl.BlockSpec((L, d), const2, pipeline_mode=single),   # pe_global
                pl.BlockSpec((d, d), const2, pipeline_mode=single),   # q_w
                pl.BlockSpec((1, d), const2, pipeline_mode=single),   # q_b
                pl.BlockSpec((d, d), const2, pipeline_mode=single),   # k_w
                pl.BlockSpec((1, d), const2, pipeline_mode=single),   # k_b
                pl.BlockSpec((d, d), const2, pipeline_mode=single),   # v_w
                pl.BlockSpec((1, d), const2, pipeline_mode=single),   # v_b
                pl.BlockSpec((d, d), const2, pipeline_mode=single),   # out_w
                pl.BlockSpec((1, d), const2, pipeline_mode=single),   # out_b
            ],
            out_specs=pl.BlockSpec((1, tq, d), batch_q),
            scratch_shapes=[pltpu.VMEM((tq, d), jnp.float32)],        # o_all
        ),
        compiler_params=pltpu.CompilerParams(
            dimension_semantics=("parallel", "parallel"),
            vmem_limit_bytes=vmem_limit,
        ),
    )(local_feat, global_flat, pe_local, pe_global,
      params["qw"], params["qb"], params["kw"], params["kb"],
      params["vw"], params["vb"], params["ow"], params["ob"])


# -------------------------- pure-JAX reference ------------------------------
def _reference(local_feat, global_feat, params, num_heads):
    n, N_p, d = local_feat.shape
    H, W = global_feat.shape[2] // 4, global_feat.shape[3] // 4
    gp = global_feat.reshape(n, d, H, 4, W, 4).mean(axis=(3, 5))
    gf = jnp.transpose(gp.reshape(n, d, H * W), (0, 2, 1))
    P_h = P_w = int(math.sqrt(N_p))
    xl, yl = _normalized_coords(P_h, P_w)
    xg, yg = _normalized_coords(H, W)
    lf = local_feat + _pos_enc(xl, yl, d)[None]
    gfp = gf + _pos_enc(xg, yg, d)[None]
    q = lf @ params["qw"] + params["qb"]
    k = gfp @ params["kw"] + params["kb"]
    v = gfp @ params["vw"] + params["vb"]
    dh = d // num_heads
    split = lambda t: t.reshape(n, -1, num_heads, dh).transpose(0, 2, 1, 3)
    qh, kh, vh = split(q), split(k), split(v)
    s = jnp.einsum("bhqc,bhkc->bhqk", qh, kh) / math.sqrt(dh)
    w = jax.nn.softmax(s, axis=-1)
    o = jnp.einsum("bhqk,bhkc->bhqc", w, vh)
    o = o.transpose(0, 2, 1, 3).reshape(n, N_p, d)
    return (lf + o) @ params["ow"] + params["ob"]


if __name__ == "__main__":
    key = jax.random.PRNGKey(0)
    n, d, num_heads = 2, 32, 4
    N_p = 16                      # 4x4 local grid
    H0 = W0 = 16                  # global feature map; pooled to 4x4 -> L=16

    ks = jax.random.split(key, 10)
    local_feat = jax.random.normal(ks[0], (n, N_p, d), dtype=jnp.float32)
    global_feat = jax.random.normal(ks[1], (n, d, H0, W0), dtype=jnp.float32)

    def _linear(kw_key, kb_key):
        w = 0.05 * jax.random.normal(kw_key, (d, d), dtype=jnp.float32)
        b = 0.05 * jax.random.normal(kb_key, (1, d), dtype=jnp.float32)
        return w, b

    qw, qb = _linear(ks[2], ks[3])
    kw, kb = _linear(ks[4], ks[5])
    vw, vb = _linear(ks[6], ks[7])
    ow, ob = _linear(ks[8], ks[9])
    params = dict(qw=qw, qb=qb, kw=kw, kb=kb, vw=vw, vb=vb, ow=ow, ob=ob)

    out = pos_enc_cross_attn(local_feat, global_feat, params, num_heads)
    out = jax.block_until_ready(out)

    ref = _reference(local_feat, global_feat, params, num_heads)
    assert out.shape == (n, N_p, d)
    # Tolerance covers TPU default f32 matmul precision (bf16 MXU passes) and
    # the approximate EUP reciprocal used for the softmax normalization.
    assert jnp.allclose(out, ref, atol=2e-2, rtol=2e-2), \
        float(jnp.max(jnp.abs(out - ref)))

    print("KERNEL_OK")
</pallas_src>

<mosaic_0001>
module attributes {stable_mosaic.version = 11 : i64} {
  func.func @_fused_kernel(%arg0: i32, %arg1: i32, %arg2: memref<1x16x32xf32, #tpu.memory_space<vmem>>, %arg3: memref<1x16x32xf32, #tpu.memory_space<vmem>>, %arg4: memref<16x32xf32, #tpu.memory_space<vmem>>, %arg5: memref<16x32xf32, #tpu.memory_space<vmem>>, %arg6: memref<32x32xf32, #tpu.memory_space<vmem>>, %arg7: memref<1x32xf32, #tpu.memory_space<vmem>>, %arg8: memref<32x32xf32, #tpu.memory_space<vmem>>, %arg9: memref<1x32xf32, #tpu.memory_space<vmem>>, %arg10: memref<32x32xf32, #tpu.memory_space<vmem>>, %arg11: memref<1x32xf32, #tpu.memory_space<vmem>>, %arg12: memref<32x32xf32, #tpu.memory_space<vmem>>, %arg13: memref<1x32xf32, #tpu.memory_space<vmem>>, %arg14: memref<1x16x32xf32, #tpu.memory_space<vmem>>, %arg15: memref<16x32xf32, #tpu.memory_space<vmem>>) attributes {dimension_semantics = [#tpu.dimension_semantics<parallel>, #tpu.dimension_semantics<parallel>], iteration_bounds = array<i64: 2, 1>, scalar_prefetch = 0 : i64, scratch_operands = 1 : i64, tpu.core_type = #tpu.core_type<tc>, window_params = [{transform_indices = @transform_0, window_bounds = array<i64: 1, 16, 32>}, {transform_indices = @transform_1, window_bounds = array<i64: 1, 16, 32>}, {transform_indices = @transform_2, window_bounds = array<i64: 16, 32>}, {pipeline_mode = #tpu.pipeline_mode<synchronous>, transform_indices = @transform_3, window_bounds = array<i64: 16, 32>}, {pipeline_mode = #tpu.pipeline_mode<synchronous>, transform_indices = @transform_4, window_bounds = array<i64: 32, 32>}, {pipeline_mode = #tpu.pipeline_mode<synchronous>, transform_indices = @transform_5, window_bounds = array<i64: 1, 32>}, {pipeline_mode = #tpu.pipeline_mode<synchronous>, transform_indices = @transform_6, window_bounds = array<i64: 32, 32>}, {pipeline_mode = #tpu.pipeline_mode<synchronous>, transform_indices = @transform_7, window_bounds = array<i64: 1, 32>}, {pipeline_mode = #tpu.pipeline_mode<synchronous>, transform_indices = @transform_8, window_bounds = array<i64: 32, 32>}, {pipeline_mode = #tpu.pipeline_mode<synchronous>, transform_indices = @transform_9, window_bounds = array<i64: 1, 32>}, {pipeline_mode = #tpu.pipeline_mode<synchronous>, transform_indices = @transform_10, window_bounds = array<i64: 32, 32>}, {pipeline_mode = #tpu.pipeline_mode<synchronous>, transform_indices = @transform_11, window_bounds = array<i64: 1, 32>}, {transform_indices = @transform_12, window_bounds = array<i64: 1, 16, 32>}]} {
    %c0 = arith.constant 0 : index
    %c0_0 = arith.constant 0 : index
    %c0_1 = arith.constant 0 : index
    %0 = vector.load %arg2[%c0, %c0_0, %c0_1] : memref<1x16x32xf32, #tpu.memory_space<vmem>>, vector<1x16x32xf32>
    %1 = vector.shape_cast %0 : vector<1x16x32xf32> to vector<16x32xf32>
    %c0_2 = arith.constant 0 : index
    %c0_3 = arith.constant 0 : index
    %2 = vector.load %arg4[%c0_2, %c0_3] : memref<16x32xf32, #tpu.memory_space<vmem>>, vector<16x32xf32>
    %3 = arith.addf %1, %2 : vector<16x32xf32>
    %c0_4 = arith.constant 0 : index
    %c0_5 = arith.constant 0 : index
    %c0_6 = arith.constant 0 : index
    %4 = vector.load %arg3[%c0_4, %c0_5, %c0_6] : memref<1x16x32xf32, #tpu.memory_space<vmem>>, vector<1x16x32xf32>
    %5 = vector.shape_cast %4 : vector<1x16x32xf32> to vector<16x32xf32>
    %c0_7 = arith.constant 0 : index
    %c0_8 = arith.constant 0 : index
    %6 = vector.load %arg5[%c0_7, %c0_8] : memref<16x32xf32, #tpu.memory_space<vmem>>, vector<16x32xf32>
    %7 = arith.addf %5, %6 : vector<16x32xf32>
    %c0_9 = arith.constant 0 : index
    %c0_10 = arith.constant 0 : index
    %8 = vector.load %arg6[%c0_9, %c0_10] : memref<32x32xf32, #tpu.memory_space<vmem>>, vector<32x32xf32>
    %cst = arith.constant dense<0.000000e+00> : vector<16x32xf32>
    %9 = tpu.matmul %3, %8, %cst {dimension_numbers = #tpu.dot_dimension_numbers<[1], [0], [0], [1], [0, 0, 1, 1], [], []>} : vector<16x32xf32>, vector<32x32xf32>, vector<16x32xf32> -> vector<16x32xf32>
    %c0_11 = arith.constant 0 : index
    %c0_12 = arith.constant 0 : index
    %10 = vector.load %arg7[%c0_11, %c0_12] : memref<1x32xf32, #tpu.memory_space<vmem>>, vector<1x32xf32>
    %11 = vector.broadcast %10 : vector<1x32xf32> to vector<16x32xf32>
    %12 = arith.addf %9, %11 : vector<16x32xf32>
    %c0_13 = arith.constant 0 : index
    %c0_14 = arith.constant 0 : index
    %13 = vector.load %arg8[%c0_13, %c0_14] : memref<32x32xf32, #tpu.memory_space<vmem>>, vector<32x32xf32>
    %cst_15 = arith.constant dense<0.000000e+00> : vector<16x32xf32>
    %14 = tpu.matmul %7, %13, %cst_15 {dimension_numbers = #tpu.dot_dimension_numbers<[1], [0], [0], [1], [0, 0, 1, 1], [], []>} : vector<16x32xf32>, vector<32x32xf32>, vector<16x32xf32> -> vector<16x32xf32>
    %c0_16 = arith.constant 0 : index
    %c0_17 = arith.constant 0 : index
    %15 = vector.load %arg9[%c0_16, %c0_17] : memref<1x32xf32, #tpu.memory_space<vmem>>, vector<1x32xf32>
    %16 = vector.broadcast %15 : vector<1x32xf32> to vector<16x32xf32>
    %17 = arith.addf %14, %16 : vector<16x32xf32>
    %c0_18 = arith.constant 0 : index
    %c0_19 = arith.constant 0 : index
    %18 = vector.load %arg10[%c0_18, %c0_19] : memref<32x32xf32, #tpu.memory_space<vmem>>, vector<32x32xf32>
    %cst_20 = arith.constant dense<0.000000e+00> : vector<16x32xf32>
    %19 = tpu.matmul %7, %18, %cst_20 {dimension_numbers = #tpu.dot_dimension_numbers<[1], [0], [0], [1], [0, 0, 1, 1], [], []>} : vector<16x32xf32>, vector<32x32xf32>, vector<16x32xf32> -> vector<16x32xf32>
    %c0_21 = arith.constant 0 : index
    %c0_22 = arith.constant 0 : index
    %20 = vector.load %arg11[%c0_21, %c0_22] : memref<1x32xf32, #tpu.memory_space<vmem>>, vector<1x32xf32>
    %21 = vector.broadcast %20 : vector<1x32xf32> to vector<16x32xf32>
    %22 = arith.addf %19, %21 : vector<16x32xf32>
    %23 = vector.extract_strided_slice %12 {offsets = [0, 0], sizes = [16, 8], strides = [1, 1]} : vector<16x32xf32> to vector<16x8xf32>
    %24 = vector.extract_strided_slice %17 {offsets = [0, 0], sizes = [16, 8], strides = [1, 1]} : vector<16x32xf32> to vector<16x8xf32>
    %cst_23 = arith.constant dense<0.000000e+00> : vector<16x16xf32>
    %25 = tpu.matmul %23, %24, %cst_23 {dimension_numbers = #tpu.dot_dimension_numbers<[1], [1], [0], [0], [0, 0, 1, 0], [], []>} : vector<16x8xf32>, vector<16x8xf32>, vector<16x16xf32> -> vector<16x16xf32>
    %cst_24 = arith.constant 0.353553385 : f32
    %26 = vector.broadcast %cst_24 : f32 to vector<16x16xf32>
    %27 = arith.mulf %25, %26 : vector<16x16xf32>
    %cst_25 = arith.constant dense<0xFF800000> : vector<16xf32>
    %28 = vector.multi_reduction <maximumf>, %27, %cst_25 [1] : vector<16x16xf32> to vector<16xf32>
    %29 = vector.shape_cast %28 : vector<16xf32> to vector<16x1xf32>
    %30 = vector.broadcast %29 : vector<16x1xf32> to vector<16x16xf32>
    %31 = arith.subf %27, %30 : vector<16x16xf32>
    %32 = math.exp %31 : vector<16x16xf32>
    %cst_26 = arith.constant dense<0.000000e+00> : vector<16xf32>
    %33 = vector.multi_reduction <add>, %32, %cst_26 [1] : vector<16x16xf32> to vector<16xf32>
    %34 = vector.shape_cast %33 : vector<16xf32> to vector<16x1xf32>
    %35 = vector.extract_strided_slice %22 {offsets = [0, 0], sizes = [16, 8], strides = [1, 1]} : vector<16x32xf32> to vector<16x8xf32>
    %cst_27 = arith.constant dense<0.000000e+00> : vector<16x8xf32>
    %36 = tpu.matmul %32, %35, %cst_27 {dimension_numbers = #tpu.dot_dimension_numbers<[1], [0], [0], [1], [0, 0, 1, 1], [], []>} : vector<16x16xf32>, vector<16x8xf32>, vector<16x8xf32> -> vector<16x8xf32>
    %37 = tpu.reciprocal %34 {approx = true} : vector<16x1xf32> -> vector<16x1xf32>
    %38 = vector.broadcast %37 : vector<16x1xf32> to vector<16x8xf32>
    %39 = arith.mulf %36, %38 : vector<16x8xf32>
    %c0_28 = arith.constant 0 : index
    %c0_29 = arith.constant 0 : index
    %40 = vector.load %arg15[%c0_28, %c0_29] : memref<16x32xf32, #tpu.memory_space<vmem>>, vector<16x8xf32>
    tpu.vector_store %arg15[%c0_28, %c0_29], %39 {strides = array<i32>} : memref<16x32xf32, #tpu.memory_space<vmem>>, vector<16x8xf32>,
    %41 = vector.extract_strided_slice %12 {offsets = [0, 8], sizes = [16, 8], strides = [1, 1]} : vector<16x32xf32> to vector<16x8xf32>
    %42 = vector.extract_strided_slice %17 {offsets = [0, 8], sizes = [16, 8], strides = [1, 1]} : vector<16x32xf32> to vector<16x8xf32>
    %cst_30 = arith.constant dense<0.000000e+00> : vector<16x16xf32>
    %43 = tpu.matmul %41, %42, %cst_30 {dimension_numbers = #tpu.dot_dimension_numbers<[1], [1], [0], [0], [0, 0, 1, 0], [], []>} : vector<16x8xf32>, vector<16x8xf32>, vector<16x16xf32> -> vector<16x16xf32>
    %cst_31 = arith.constant 0.353553385 : f32
    %44 = vector.broadcast %cst_31 : f32 to vector<16x16xf32>
    %45 = arith.mulf %43, %44 : vector<16x16xf32>
    %cst_32 = arith.constant dense<0xFF800000> : vector<16xf32>
    %46 = vector.multi_reduction <maximumf>, %45, %cst_32 [1] : vector<16x16xf32> to vector<16xf32>
    %47 = vector.shape_cast %46 : vector<16xf32> to vector<16x1xf32>
    %48 = vector.broadcast %47 : vector<16x1xf32> to vector<16x16xf32>
    %49 = arith.subf %45, %48 : vector<16x16xf32>
    %50 = math.exp %49 : vector<16x16xf32>
    %cst_33 = arith.constant dense<0.000000e+00> : vector<16xf32>
    %51 = vector.multi_reduction <add>, %50, %cst_33 [1] : vector<16x16xf32> to vector<16xf32>
    %52 = vector.shape_cast %51 : vector<16xf32> to vector<16x1xf32>
    %53 = vector.extract_strided_slice %22 {offsets = [0, 8], sizes = [16, 8], strides = [1, 1]} : vector<16x32xf32> to vector<16x8xf32>
    %cst_34 = arith.constant dense<0.000000e+00> : vector<16x8xf32>
    %54 = tpu.matmul %50, %53, %cst_34 {dimension_numbers = #tpu.dot_dimension_numbers<[1], [0], [0], [1], [0, 0, 1, 1], [], []>} : vector<16x16xf32>, vector<16x8xf32>, vector<16x8xf32> -> vector<16x8xf32>
    %55 = tpu.reciprocal %52 {approx = true} : vector<16x1xf32> -> vector<16x1xf32>
    %56 = vector.broadcast %55 : vector<16x1xf32> to vector<16x8xf32>
    %57 = arith.mulf %54, %56 : vector<16x8xf32>
    %c0_35 = arith.constant 0 : index
    %c8 = arith.constant 8 : index
    %58 = vector.load %arg15[%c0_35, %c8] : memref<16x32xf32, #tpu.memory_space<vmem>>, vector<16x8xf32>
    tpu.vector_store %arg15[%c0_35, %c8], %57 {strides = array<i32>} : memref<16x32xf32, #tpu.memory_space<vmem>>, vector<16x8xf32>,
    %59 = vector.extract_strided_slice %12 {offsets = [0, 16], sizes = [16, 8], strides = [1, 1]} : vector<16x32xf32> to vector<16x8xf32>
    %60 = vector.extract_strided_slice %17 {offsets = [0, 16], sizes = [16, 8], strides = [1, 1]} : vector<16x32xf32> to vector<16x8xf32>
    %cst_36 = arith.constant dense<0.000000e+00> : vector<16x16xf32>
    %61 = tpu.matmul %59, %60, %cst_36 {dimension_numbers = #tpu.dot_dimension_numbers<[1], [1], [0], [0], [0, 0, 1, 0], [], []>} : vector<16x8xf32>, vector<16x8xf32>, vector<16x16xf32> -> vector<16x16xf32>
    %cst_37 = arith.constant 0.353553385 : f32
    %62 = vector.broadcast %cst_37 : f32 to vector<16x16xf32>
    %63 = arith.mulf %61, %62 : vector<16x16xf32>
    %cst_38 = arith.constant dense<0xFF800000> : vector<16xf32>
    %64 = vector.multi_reduction <maximumf>, %63, %cst_38 [1] : vector<16x16xf32> to vector<16xf32>
    %65 = vector.shape_cast %64 : vector<16xf32> to vector<16x1xf32>
    %66 = vector.broadcast %65 : vector<16x1xf32> to vector<16x16xf32>
    %67 = arith.subf %63, %66 : vector<16x16xf32>
    %68 = math.exp %67 : vector<16x16xf32>
    %cst_39 = arith.constant dense<0.000000e+00> : vector<16xf32>
    %69 = vector.multi_reduction <add>, %68, %cst_39 [1] : vector<16x16xf32> to vector<16xf32>
    %70 = vector.shape_cast %69 : vector<16xf32> to vector<16x1xf32>
    %71 = vector.extract_strided_slice %22 {offsets = [0, 16], sizes = [16, 8], strides = [1, 1]} : vector<16x32xf32> to vector<16x8xf32>
    %cst_40 = arith.constant dense<0.000000e+00> : vector<16x8xf32>
    %72 = tpu.matmul %68, %71, %cst_40 {dimension_numbers = #tpu.dot_dimension_numbers<[1], [0], [0], [1], [0, 0, 1, 1], [], []>} : vector<16x16xf32>, vector<16x8xf32>, vector<16x8xf32> -> vector<16x8xf32>
    %73 = tpu.reciprocal %70 {approx = true} : vector<16x1xf32> -> vector<16x1xf32>
    %74 = vector.broadcast %73 : vector<16x1xf32> to vector<16x8xf32>
    %75 = arith.mulf %72, %74 : vector<16x8xf32>
    %c0_41 = arith.constant 0 : index
    %c16 = arith.constant 16 : index
    %76 = vector.load %arg15[%c0_41, %c16] : memref<16x32xf32, #tpu.memory_space<vmem>>, vector<16x8xf32>
    tpu.vector_store %arg15[%c0_41, %c16], %75 {strides = array<i32>} : memref<16x32xf32, #tpu.memory_space<vmem>>, vector<16x8xf32>,
    %77 = vector.extract_strided_slice %12 {offsets = [0, 24], sizes = [16, 8], strides = [1, 1]} : vector<16x32xf32> to vector<16x8xf32>
    %78 = vector.extract_strided_slice %17 {offsets = [0, 24], sizes = [16, 8], strides = [1, 1]} : vector<16x32xf32> to vector<16x8xf32>
    %cst_42 = arith.constant dense<0.000000e+00> : vector<16x16xf32>
    %79 = tpu.matmul %77, %78, %cst_42 {dimension_numbers = #tpu.dot_dimension_numbers<[1], [1], [0], [0], [0, 0, 1, 0], [], []>} : vector<16x8xf32>, vector<16x8xf32>, vector<16x16xf32> -> vector<16x16xf32>
    %cst_43 = arith.constant 0.353553385 : f32
    %80 = vector.broadcast %cst_43 : f32 to vector<16x16xf32>
    %81 = arith.mulf %79, %80 : vector<16x16xf32>
    %cst_44 = arith.constant dense<0xFF800000> : vector<16xf32>
    %82 = vector.multi_reduction <maximumf>, %81, %cst_44 [1] : vector<16x16xf32> to vector<16xf32>
    %83 = vector.shape_cast %82 : vector<16xf32> to vector<16x1xf32>
    %84 = vector.broadcast %83 : vector<16x1xf32> to vector<16x16xf32>
    %85 = arith.subf %81, %84 : vector<16x16xf32>
    %86 = math.exp %85 : vector<16x16xf32>
    %cst_45 = arith.constant dense<0.000000e+00> : vector<16xf32>
    %87 = vector.multi_reduction <add>, %86, %cst_45 [1] : vector<16x16xf32> to vector<16xf32>
    %88 = vector.shape_cast %87 : vector<16xf32> to vector<16x1xf32>
    %89 = vector.extract_strided_slice %22 {offsets = [0, 24], sizes = [16, 8], strides = [1, 1]} : vector<16x32xf32> to vector<16x8xf32>
    %cst_46 = arith.constant dense<0.000000e+00> : vector<16x8xf32>
    %90 = tpu.matmul %86, %89, %cst_46 {dimension_numbers = #tpu.dot_dimension_numbers<[1], [0], [0], [1], [0, 0, 1, 1], [], []>} : vector<16x16xf32>, vector<16x8xf32>, vector<16x8xf32> -> vector<16x8xf32>
    %91 = tpu.reciprocal %88 {approx = true} : vector<16x1xf32> -> vector<16x1xf32>
    %92 = vector.broadcast %91 : vector<16x1xf32> to vector<16x8xf32>
    %93 = arith.mulf %90, %92 : vector<16x8xf32>
    %c0_47 = arith.constant 0 : index
    %c24 = arith.constant 24 : index
    %94 = vector.load %arg15[%c0_47, %c24] : memref<16x32xf32, #tpu.memory_space<vmem>>, vector<16x8xf32>
    tpu.vector_store %arg15[%c0_47, %c24], %93 {strides = array<i32>} : memref<16x32xf32, #tpu.memory_space<vmem>>, vector<16x8xf32>,
    %c0_48 = arith.constant 0 : index
    %c0_49 = arith.constant 0 : index
    %95 = vector.load %arg15[%c0_48, %c0_49] : memref<16x32xf32, #tpu.memory_space<vmem>>, vector<16x32xf32>
    %96 = arith.addf %3, %95 : vector<16x32xf32>
    %c0_50 = arith.constant 0 : index
    %c0_51 = arith.constant 0 : index
    %97 = vector.load %arg12[%c0_50, %c0_51] : memref<32x32xf32, #tpu.memory_space<vmem>>, vector<32x32xf32>
    %cst_52 = arith.constant dense<0.000000e+00> : vector<16x32xf32>
    %98 = tpu.matmul %96, %97, %cst_52 {dimension_numbers = #tpu.dot_dimension_numbers<[1], [0], [0], [1], [0, 0, 1, 1], [], []>} : vector<16x32xf32>, vector<32x32xf32>, vector<16x32xf32> -> vector<16x32xf32>
    %c0_53 = arith.constant 0 : index
    %c0_54 = arith.constant 0 : index
    %99 = vector.load %arg13[%c0_53, %c0_54] : memref<1x32xf32, #tpu.memory_space<vmem>>, vector<1x32xf32>
    %100 = vector.broadcast %99 : vector<1x32xf32> to vector<16x32xf32>
    %101 = arith.addf %98, %100 : vector<16x32xf32>
    %c0_55 = arith.constant 0 : index
    %c0_56 = arith.constant 0 : index
    %c0_57 = arith.constant 0 : index
    %102 = vector.load %arg14[%c0_55, %c0_56, %c0_57] : memref<1x16x32xf32, #tpu.memory_space<vmem>>, vector<1x16x32xf32>
    %103 = vector.shape_cast %102 : vector<1x16x32xf32> to vector<16x32xf32>
    %104 = vector.shape_cast %101 : vector<16x32xf32> to vector<1x16x32xf32>
    tpu.vector_store %arg14[%c0_55, %c0_56, %c0_57], %104 {strides = array<i32>} : memref<1x16x32xf32, #tpu.memory_space<vmem>>, vector<1x16x32xf32>,
    return
  }
  func.func @transform_0(%arg0: i32, %arg1: i32) -> (i32, i32, i32) {
    %c0_i32 = arith.constant 0 : i32
    %c0_i32_0 = arith.constant 0 : i32
    return %arg0, %arg1, %c0_i32 : i32, i32, i32
  }
  func.func @transform_1(%arg0: i32, %arg1: i32) -> (i32, i32, i32) {
    %c0_i32 = arith.constant 0 : i32
    %c0_i32_0 = arith.constant 0 : i32
    %c0_i32_1 = arith.constant 0 : i32
    return %arg0, %c0_i32, %c0_i32_0 : i32, i32, i32
  }
  func.func @transform_2(%arg0: i32, %arg1: i32) -> (i32, i32) {
    %c0_i32 = arith.constant 0 : i32
    %c0_i32_0 = arith.constant 0 : i32
    return %arg1, %c0_i32 : i32, i32
  }
  func.func @transform_3(%arg0: i32, %arg1: i32) -> (i32, i32) {
    %c0_i32 = arith.constant 0 : i32
    %c0_i32_0 = arith.constant 0 : i32
    %c0_i32_1 = arith.constant 0 : i32
    return %c0_i32, %c0_i32_0 : i32, i32
  }
  func.func @transform_4(%arg0: i32, %arg1: i32) -> (i32, i32) {
    %c0_i32 = arith.constant 0 : i32
    %c0_i32_0 = arith.constant 0 : i32
    %c0_i32_1 = arith.constant 0 : i32
    return %c0_i32, %c0_i32_0 : i32, i32
  }
  func.func @transform_5(%arg0: i32, %arg1: i32) -> (i32, i32) {
    %c0_i32 = arith.constant 0 : i32
    %c0_i32_0 = arith.constant 0 : i32
    %c0_i32_1 = arith.constant 0 : i32
    return %c0_i32, %c0_i32_0 : i32, i32
  }
  func.func @transform_6(%arg0: i32, %arg1: i32) -> (i32, i32) {
    %c0_i32 = arith.constant 0 : i32
    %c0_i32_0 = arith.constant 0 : i32
    %c0_i32_1 = arith.constant 0 : i32
    return %c0_i32, %c0_i32_0 : i32, i32
  }
  func.func @transform_7(%arg0: i32, %arg1: i32) -> (i32, i32) {
    %c0_i32 = arith.constant 0 : i32
    %c0_i32_0 = arith.constant 0 : i32
    %c0_i32_1 = arith.constant 0 : i32
    return %c0_i32, %c0_i32_0 : i32, i32
  }
  func.func @transform_8(%arg0: i32, %arg1: i32) -> (i32, i32) {
    %c0_i32 = arith.constant 0 : i32
    %c0_i32_0 = arith.constant 0 : i32
    %c0_i32_1 = arith.constant 0 : i32
    return %c0_i32, %c0_i32_0 : i32, i32
  }
  func.func @transform_9(%arg0: i32, %arg1: i32) -> (i32, i32) {
    %c0_i32 = arith.constant 0 : i32
    %c0_i32_0 = arith.constant 0 : i32
    %c0_i32_1 = arith.constant 0 : i32
    return %c0_i32, %c0_i32_0 : i32, i32
  }
  func.func @transform_10(%arg0: i32, %arg1: i32) -> (i32, i32) {
    %c0_i32 = arith.constant 0 : i32
    %c0_i32_0 = arith.constant 0 : i32
    %c0_i32_1 = arith.constant 0 : i32
    return %c0_i32, %c0_i32_0 : i32, i32
  }
  func.func @transform_11(%arg0: i32, %arg1: i32) -> (i32, i32) {
    %c0_i32 = arith.constant 0 : i32
    %c0_i32_0 = arith.constant 0 : i32
    %c0_i32_1 = arith.constant 0 : i32
    return %c0_i32, %c0_i32_0 : i32, i32
  }
  func.func @transform_12(%arg0: i32, %arg1: i32) -> (i32, i32, i32) {
    %c0_i32 = arith.constant 0 : i32
    %c0_i32_0 = arith.constant 0 : i32
    return %arg0, %arg1, %c0_i32 : i32, i32, i32
  }
}

</mosaic_0001>

<llo_original>
// kernel: tpu_custom_call.1
$region0: #{tpu_custom_call.1}
  #allocation0 [shape = 'u32[]', space=smem, size = 0x4, offset = 0x4, fixed_abs, tag = 'smem constant byte address 0x4 - core index']
  #allocation1 [shape = 'u32[144,128]{1,0:T(1,128)}', space=vmem, size = 0x12000, scoped, tag = 'internal scratch']
  #allocation2 [shape = 'f32[16,32]{1,0:T(8,128)}', space=vmem, size = 0x2000, scoped, tag = 'scratch operand']
  %s0 = inlined_call_operand.hbm [shape: f32[2,16,32], index: 0, kind: input, shape index: {}]
  %s1 = inlined_call_operand.hbm [shape: f32[2,16,32], index: 1, kind: input, shape index: {}]
  %s2 = inlined_call_operand.hbm [shape: f32[16,32], index: 2, kind: input, shape index: {}]
  %s3 = inlined_call_operand.hbm [shape: f32[16,32], index: 3, kind: input, shape index: {}]
  %s4 = inlined_call_operand.hbm [shape: f32[32,32], index: 4, kind: input, shape index: {}]
  %s5 = inlined_call_operand.vmem [shape: f32[1,32], index: 5, kind: input, shape index: {}]
  %s6 = inlined_call_operand.hbm [shape: f32[32,32], index: 6, kind: input, shape index: {}]
  %s7 = inlined_call_operand.vmem [shape: f32[1,32], index: 7, kind: input, shape index: {}]
  %s8 = inlined_call_operand.hbm [shape: f32[32,32], index: 8, kind: input, shape index: {}]
  %s9 = inlined_call_operand.vmem [shape: f32[1,32], index: 9, kind: input, shape index: {}]
  %s10 = inlined_call_operand.vmem [shape: f32[32,32], index: 10, kind: input, shape index: {}]
  %s11 = inlined_call_operand.vmem [shape: f32[1,32], index: 11, kind: input, shape index: {}]
  %s12 = inlined_call_operand.hbm [shape: f32[2,16,32], index: 12, kind: output, shape index: {}]
  %s13 = sld [smem:[#allocation0]]
  $region109: #{tpu_custom_call.1} parent=0
    _
  %s15 = ssub.s32 1, %s13
  %s16 = scalar_select 0, %s15, %s13
  $region1: #{tpu_custom_call.1} parent=0
    #allocation3 [shape = 'u8[16384]{0}', space=vmem, size = 0x4000, scoped, tag = 'input window, operand 0']
    #allocation4 [shape = 's32[2]{0}', space=sflag, size = 0x8, scoped, tag = 'scoped memory for tpu_custom_call.1']
    #allocation5 [shape = 's32[2]{0}', space=sflag, size = 0x8, scoped, tag = 'scoped memory for tpu_custom_call.1']
    #allocation6 [shape = 'u8[16384]{0}', space=vmem, size = 0x4000, scoped, tag = 'input window, operand 1']
    #allocation7 [shape = 's32[2]{0}', space=sflag, size = 0x8, scoped, tag = 'scoped memory for tpu_custom_call.1']
    #allocation8 [shape = 'u8[8192]{0}', space=vmem, size = 0x2000, scoped, tag = 'input window, operand 2, single buffered']
    #allocation9 [shape = 'u8[8192]{0}', space=vmem, size = 0x2000, scoped, tag = 'input window, operand 3, single buffered']
    #allocation10 [shape = 's32[1]{0}', space=sflag, size = 0x4, scoped, tag = 'scoped memory for tpu_custom_call.1']
    #allocation11 [shape = 'u8[16384]{0}', space=vmem, size = 0x4000, scoped, tag = 'input window, operand 4, single buffered']
    #allocation12 [shape = 'u8[16384]{0}', space=vmem, size = 0x4000, scoped, tag = 'input window, operand 6, single buffered']
    #allocation13 [shape = 's32[1]{0}', space=sflag, size = 0x4, scoped, tag = 'scoped memory for tpu_custom_call.1']
    #allocation14 [shape = 'u8[16384]{0}', space=vmem, size = 0x4000, scoped, tag = 'input window, operand 8, single buffered']
    #allocation15 [shape = 'u8[16384]{0}', space=vmem, size = 0x4000, scoped, tag = 'output window, operand 0']
    %17 = vsyncpa [#allocation4], 0
    %s18 = scalar_lea.sflag [#allocation4], 1
    %19 = vsyncpa %s18, 0
    %20 = vsyncpa [#allocation7], 0
    %s21 = scalar_lea.sflag [#allocation7], 1
    %22 = vsyncpa %s21, 0
    %23 = vsyncpa [#allocation10], 0
    %24 = vsyncpa [#allocation13], 0
    %25 = vsyncpa [#allocation5], 0
    %s26 = scalar_lea.sflag [#allocation5], 1
    %27 = vsyncpa %s26, 0
    loop: start=0, step=1, limit=4
    $region2: #{tpu_custom_call.1} parent=1 // loop_pre_header
      _
    $region3: #{tpu_custom_call.1} parent=1 // loop_header
      %s29 = sphi 0, %s33
      %p30 = scmp.ge.s32.totalorder %s29, 4
      %s36 = sphi 0, %s48
      %s37 = sphi 0, %s44
      %s38 = sphi 0, %s36
      %s39 = sphi 0, %s37
      %s40 = sphi 0, %s38
      %s41 = sphi 0, %s39
      %s53 = sphi 0, %s55
      %s56 = sphi 0, %s53
      %s57 = sphi 0, %s56
      %s73 = sphi 0, %s57
      %s79 = sphi 0, %s81
      %s82 = sphi 0, %s79
      %s83 = sphi 0, %s82
      %s99 = sphi 0, %s83
      %s105 = sphi 0, %s107
      %s108 = sphi 0, %s105
      %s109 = sphi 0, %s108
      %s125 = sphi 0, %s109
      %s129 = sphi 0, %s129
      %s131 = sphi 0, %s129
      %s132 = sphi 0, %s131
      %s146 = sphi 0, %s132
      %s150 = sphi 0, %s150
      %s152 = sphi 0, %s150
      %s153 = sphi 0, %s152
      %s167 = sphi 0, %s153
      %s171 = sphi 0, %s171
      %s173 = sphi 0, %s171
      %s174 = sphi 0, %s173
      %s188 = sphi 0, %s174
      %s192 = sphi 0, %s192
      %s194 = sphi 0, %s192
      %s195 = sphi 0, %s194
      %s209 = sphi 0, %s195
      %s213 = sphi 0, %s213
      %s215 = sphi 0, %s213
      %s216 = sphi 0, %s215
      %s230 = sphi 0, %s216
      %s234 = sphi 0, %s234
      %s236 = sphi 0, %s234
      %s237 = sphi 0, %s236
      %s251 = sphi 0, %s237
      %s255 = sphi 0, %s255
      %s257 = sphi 0, %s255
      %s258 = sphi 0, %s257
      %s272 = sphi 0, %s258
      %s276 = sphi 0, %s276
      %s278 = sphi 0, %s276
      %s279 = sphi 0, %s278
      %s293 = sphi 0, %s279
      %s297 = sphi 0, %s297
      %s299 = sphi 0, %s297
      %s300 = sphi 0, %s299
      %s314 = sphi 0, %s300
      %s322 = sphi 0, %s324
      %s325 = sphi 0, %s322
      %s326 = sphi 0, %s325
      %s342 = sphi 0, %s326
    $region4: #{tpu_custom_call.1} parent=1 // loop_header_branch
      %32 = sbr.rel (%p30) target = $region8
    $region5: #{tpu_custom_call.1} parent=1 // loop_body
      %s34 = ssub.s32 %s29, 1
      %s35 = ssub.s32 %s29, 2
      %s42 = sadd.s32 1, %s37
      %p43 = scmp.ge.s32.totalorder %s42, 1
      %s44 = scalar_select %p43, 0, %s42
      %s45 = sadd.s32 1, %s36
      %s46 = scalar_select %p43, %s45, %s36
      %p47 = scmp.ge.s32.totalorder %s46, 2
      %s48 = scalar_select %p47, 0, %s46
      %s49 = ssub.s32 %s36, %s48
      %s50 = ssub.s32 %s37, %s44
      %s51 = sor.u32 %s49, %s50
      %p52 = scmp.eq.s32.totalorder %s51, 0
      %s54 = sadd.s32 %s53, 1
      %s55 = scalar_select %p52, %s53, %s54
      %p58 = pneg %p52
      %p59 = scmp.eq.s32.totalorder %s29, 1
      %p60 = por %p58, %p59
      %p61 = scmp.ne.s32.totalorder %s53, %s56
      %p62 = scmp.eq.s32.totalorder %s29, 0
      %p63 = por %p61, %p62
      %p64 = scmp.ne.s32.totalorder %s53, %s56
      %p65 = scmp.eq.s32.totalorder %s34, 1
      %p66 = por %p64, %p65
      %p67 = scmp.ne.s32.totalorder %s56, %s57
      %p68 = scmp.eq.s32.totalorder %s34, 0
      %p69 = por %p67, %p68
      %p70 = scmp.ne.s32.totalorder %s56, %s57
      %p71 = scmp.eq.s32.totalorder %s35, 1
      %p72 = por %p70, %p71
      %p74 = scmp.ne.s32.totalorder %s57, %s73
      %p75 = scmp.eq.s32.totalorder %s35, 0
      %p76 = por %p74, %p75
      %s77 = ssub.s32 %s36, %s48
      %p78 = scmp.eq.s32.totalorder %s77, 0
      %s80 = sadd.s32 %s79, 1
      %s81 = scalar_select %p78, %s79, %s80
      %p84 = pneg %p78
      %p85 = scmp.eq.s32.totalorder %s29, 1
      %p86 = por %p84, %p85
      %p87 = scmp.ne.s32.totalorder %s79, %s82
      %p88 = scmp.eq.s32.totalorder %s29, 0
      %p89 = por %p87, %p88
      %p90 = scmp.ne.s32.totalorder %s79, %s82
      %p91 = scmp.eq.s32.totalorder %s34, 1
      %p92 = por %p90, %p91
      %p93 = scmp.ne.s32.totalorder %s82, %s83
      %p94 = scmp.eq.s32.totalorder %s34, 0
      %p95 = por %p93, %p94
      %p96 = scmp.ne.s32.totalorder %s82, %s83
      %p97 = scmp.eq.s32.totalorder %s35, 1
      %p98 = por %p96, %p97
      %p100 = scmp.ne.s32.totalorder %s83, %s99
      %p101 = scmp.eq.s32.totalorder %s35, 0
      %p102 = por %p100, %p101
      %s103 = ssub.s32 %s37, %s44
      %p104 = scmp.eq.s32.totalorder %s103, 0
      %s106 = sadd.s32 %s105, 1
      %s107 = scalar_select %p104, %s105, %s106
      %p110 = pneg %p104
      %p111 = scmp.eq.s32.totalorder %s29, 1
      %p112 = por %p110, %p111
      %p113 = scmp.ne.s32.totalorder %s105, %s108
      %p114 = scmp.eq.s32.totalorder %s29, 0
      %p115 = por %p113, %p114
      %p116 = scmp.ne.s32.totalorder %s105, %s108
      %p117 = scmp.eq.s32.totalorder %s34, 1
      %p118 = por %p116, %p117
      %p119 = scmp.ne.s32.totalorder %s108, %s109
      %p120 = scmp.eq.s32.totalorder %s34, 0
      %p121 = por %p119, %p120
      %p122 = scmp.ne.s32.totalorder %s108, %s109
      %p123 = scmp.eq.s32.totalorder %s35, 1
      %p124 = por %p122, %p123
      %p126 = scmp.ne.s32.totalorder %s109, %s125
      %p127 = scmp.eq.s32.totalorder %s35, 0
      %p128 = por %p126, %p127
      %s130 = sadd.s32 %s129, 1
      %p133 = scmp.eq.s32.totalorder %s29, 1
      %p134 = scmp.ne.s32.totalorder %s129, %s131
      %p135 = scmp.eq.s32.totalorder %s29, 0
      %p136 = por %p134, %p135
      %p137 = scmp.ne.s32.totalorder %s129, %s131
      %p138 = scmp.eq.s32.totalorder %s34, 1
      %p139 = por %p137, %p138
      %p140 = scmp.ne.s32.totalorder %s131, %s132
      %p141 = scmp.eq.s32.totalorder %s34, 0
      %p142 = por %p140, %p141
      %p143 = scmp.ne.s32.totalorder %s131, %s132
      %p144 = scmp.eq.s32.totalorder %s35, 1
      %p145 = por %p143, %p144
      %p147 = scmp.ne.s32.totalorder %s132, %s146
      %p148 = scmp.eq.s32.totalorder %s35, 0
      %p149 = por %p147, %p148
      %s151 = sadd.s32 %s150, 1
      %p154 = scmp.eq.s32.totalorder %s29, 1
      %p155 = scmp.ne.s32.totalorder %s150, %s152
      %p156 = scmp.eq.s32.totalorder %s29, 0
      %p157 = por %p155, %p156
      %p158 = scmp.ne.s32.totalorder %s150, %s152
      %p159 = scmp.eq.s32.totalorder %s34, 1
      %p160 = por %p158, %p159
      %p161 = scmp.ne.s32.totalorder %s152, %s153
      %p162 = scmp.eq.s32.totalorder %s34, 0
      %p163 = por %p161, %p162
      %p164 = scmp.ne.s32.totalorder %s152, %s153
      %p165 = scmp.eq.s32.totalorder %s35, 1
      %p166 = por %p164, %p165
      %p168 = scmp.ne.s32.totalorder %s153, %s167
      %p169 = scmp.eq.s32.totalorder %s35, 0
      %p170 = por %p168, %p169
      %s172 = sadd.s32 %s171, 1
      %p175 = scmp.eq.s32.totalorder %s29, 1
      %p176 = scmp.ne.s32.totalorder %s171, %s173
      %p177 = scmp.eq.s32.totalorder %s29, 0
      %p178 = por %p176, %p177
      %p179 = scmp.ne.s32.totalorder %s171, %s173
      %p180 = scmp.eq.s32.totalorder %s34, 1
      %p181 = por %p179, %p180
      %p182 = scmp.ne.s32.totalorder %s173, %s174
      %p183 = scmp.eq.s32.totalorder %s34, 0
      %p184 = por %p182, %p183
      %p185 = scmp.ne.s32.totalorder %s173, %s174
      %p186 = scmp.eq.s32.totalorder %s35, 1
      %p187 = por %p185, %p186
      %p189 = scmp.ne.s32.totalorder %s174, %s188
      %p190 = scmp.eq.s32.totalorder %s35, 0
      %p191 = por %p189, %p190
      %s193 = sadd.s32 %s192, 1
      %p196 = scmp.eq.s32.totalorder %s29, 1
      %p197 = scmp.ne.s32.totalorder %s192, %s194
      %p198 = scmp.eq.s32.totalorder %s29, 0
      %p199 = por %p197, %p198
      %p200 = scmp.ne.s32.totalorder %s192, %s194
      %p201 = scmp.eq.s32.totalorder %s34, 1
      %p202 = por %p200, %p201
      %p203 = scmp.ne.s32.totalorder %s194, %s195
      %p204 = scmp.eq.s32.totalorder %s34, 0
      %p205 = por %p203, %p204
      %p206 = scmp.ne.s32.totalorder %s194, %s195
      %p207 = scmp.eq.s32.totalorder %s35, 1
      %p208 = por %p206, %p207
      %p210 = scmp.ne.s32.totalorder %s195, %s209
      %p211 = scmp.eq.s32.totalorder %s35, 0
      %p212 = por %p210, %p211
      %s214 = sadd.s32 %s213, 1
      %p217 = scmp.eq.s32.totalorder %s29, 1
      %p218 = scmp.ne.s32.totalorder %s213, %s215
      %p219 = scmp.eq.s32.totalorder %s29, 0
      %p220 = por %p218, %p219
      %p221 = scmp.ne.s32.totalorder %s213, %s215
      %p222 = scmp.eq.s32.totalorder %s34, 1
      %p223 = por %p221, %p222
      %p224 = scmp.ne.s32.totalorder %s215, %s216
      %p225 = scmp.eq.s32.totalorder %s34, 0
      %p226 = por %p224, %p225
      %p227 = scmp.ne.s32.totalorder %s215, %s216
      %p228 = scmp.eq.s32.totalorder %s35, 1
      %p229 = por %p227, %p228
      %p231 = scmp.ne.s32.totalorder %s216, %s230
      %p232 = scmp.eq.s32.totalorder %s35, 0
      %p233 = por %p231, %p232
      %s235 = sadd.s32 %s234, 1
      %p238 = scmp.eq.s32.totalorder %s29, 1
      %p239 = scmp.ne.s32.totalorder %s234, %s236
      %p240 = scmp.eq.s32.totalorder %s29, 0
      %p241 = por %p239, %p240
      %p242 = scmp.ne.s32.totalorder %s234, %s236
      %p243 = scmp.eq.s32.totalorder %s34, 1
      %p244 = por %p242, %p243
      %p245 = scmp.ne.s32.totalorder %s236, %s237
      %p246 = scmp.eq.s32.totalorder %s34, 0
      %p247 = por %p245, %p246
      %p248 = scmp.ne.s32.totalorder %s236, %s237
      %p249 = scmp.eq.s32.totalorder %s35, 1
      %p250 = por %p248, %p249
      %p252 = scmp.ne.s32.totalorder %s237, %s251
      %p253 = scmp.eq.s32.totalorder %s35, 0
      %p254 = por %p252, %p253
      %s256 = sadd.s32 %s255, 1
      %p259 = scmp.eq.s32.totalorder %s29, 1
      %p260 = scmp.ne.s32.totalorder %s255, %s257
      %p261 = scmp.eq.s32.totalorder %s29, 0
      %p262 = por %p260, %p261
      %p263 = scmp.ne.s32.totalorder %s255, %s257
      %p264 = scmp.eq.s32.totalorder %s34, 1
      %p265 = por %p263, %p264
      %p266 = scmp.ne.s32.totalorder %s257, %s258
      %p267 = scmp.eq.s32.totalorder %s34, 0
      %p268 = por %p266, %p267
      %p269 = scmp.ne.s32.totalorder %s257, %s258
      %p270 = scmp.eq.s32.totalorder %s35, 1
      %p271 = por %p269, %p270
      %p273 = scmp.ne.s32.totalorder %s258, %s272
      %p274 = scmp.eq.s32.totalorder %s35, 0
      %p275 = por %p273, %p274
      %s277 = sadd.s32 %s276, 1
      %p280 = scmp.eq.s32.totalorder %s29, 1
      %p281 = scmp.ne.s32.totalorder %s276, %s278
      %p282 = scmp.eq.s32.totalorder %s29, 0
      %p283 = por %p281, %p282
      %p284 = scmp.ne.s32.totalorder %s276, %s278
      %p285 = scmp.eq.s32.totalorder %s34, 1
      %p286 = por %p284, %p285
      %p287 = scmp.ne.s32.totalorder %s278, %s279
      %p288 = scmp.eq.s32.totalorder %s34, 0
      %p289 = por %p287, %p288
      %p290 = scmp.ne.s32.totalorder %s278, %s279
      %p291 = scmp.eq.s32.totalorder %s35, 1
      %p292 = por %p290, %p291
      %p294 = scmp.ne.s32.totalorder %s279, %s293
      %p295 = scmp.eq.s32.totalorder %s35, 0
      %p296 = por %p294, %p295
      %s298 = sadd.s32 %s297, 1
      %p301 = scmp.eq.s32.totalorder %s29, 1
      %p302 = scmp.ne.s32.totalorder %s297, %s299
      %p303 = scmp.eq.s32.totalorder %s29, 0
      %p304 = por %p302, %p303
      %p305 = scmp.ne.s32.totalorder %s297, %s299
      %p306 = scmp.eq.s32.totalorder %s34, 1
      %p307 = por %p305, %p306
      %p308 = scmp.ne.s32.totalorder %s299, %s300
      %p309 = scmp.eq.s32.totalorder %s34, 0
      %p310 = por %p308, %p309
      %p311 = scmp.ne.s32.totalorder %s299, %s300
      %p312 = scmp.eq.s32.totalorder %s35, 1
      %p313 = por %p311, %p312
      %p315 = scmp.ne.s32.totalorder %s300, %s314
      %p316 = scmp.eq.s32.totalorder %s35, 0
      %p317 = por %p315, %p316
      %s318 = ssub.s32 %s36, %s48
      %s319 = ssub.s32 %s37, %s44
      %s320 = sor.u32 %s318, %s319
      %p321 = scmp.eq.s32.totalorder %s320, 0
      %s323 = sadd.s32 %s322, 1
      %s324 = scalar_select %p321, %s322, %s323
      %p327 = pneg %p321
      %p328 = scmp.eq.s32.totalorder %s29, 1
      %p329 = por %p327, %p328
      %p330 = scmp.ne.s32.totalorder %s322, %s325
      %p331 = scmp.eq.s32.totalorder %s29, 0
      %p332 = por %p330, %p331
      %p333 = scmp.ne.s32.totalorder %s322, %s325
      %p334 = scmp.eq.s32.totalorder %s34, 1
      %p335 = por %p333, %p334
      %p336 = scmp.ne.s32.totalorder %s325, %s326
      %p337 = scmp.eq.s32.totalorder %s34, 0
      %p338 = por %p336, %p337
      %p339 = scmp.ne.s32.totalorder %s325, %s326
      %p340 = scmp.eq.s32.totalorder %s35, 1
      %p341 = por %p339, %p340
      %p343 = scmp.ne.s32.totalorder %s326, %s342
      %p344 = scmp.eq.s32.totalorder %s35, 0
      %p345 = por %p343, %p344
      %p346 = scmp.le.s32.totalorder 1, %s29
      %p347 = scmp.lt.s32.totalorder %s29, 3
      %p348 = pnand %p346, %p347
      %p349 = pneg %p348
      // Predicated region
      $region9: #{tpu_custom_call.1} parent=5 // pred_check
        _
      $region10: #{tpu_custom_call.1} parent=5 // pred_check_branch
        %351 = sbr.rel (%p348) target = $region12
      $region11: #{tpu_custom_call.1} parent=5 // pred_region
        %s352 = ssub.s32 %s29, 1
        // Predicated region
        $region13: #{tpu_custom_call.1} parent=11 // pred_check
          %p353 = pneg %p121
        $region14: #{tpu_custom_call.1} parent=11 // pred_check_branch
          %355 = sbr.rel (%p353) target = $region16
        $region15: #{tpu_custom_call.1} parent=11 // pred_region
          %s356 = smul.u32 2, %s39
          %s358 = ssub.s32 256, 256
          %359 = vsyncadd [#allocation7], %s358
          %s360 = smul.addr %s356, 128
          %s361 = scalar_lea.hbm %s2, %s360
          %s362 = sshll.u32 [#allocation8], 4
          %s363 = int_to_ptr.vmem [resolvable:$true] %s362
          %368 = dma.hbm_to_vmem [thread:$0]  %s361, 256, %s363, [#allocation7], 128, 128, 8
        $region16: #{tpu_custom_call.1} parent=11 // pred_fallthru
          _
        // Predicated region
        $region17: #{tpu_custom_call.1} parent=11 // pred_check
          %p369 = pneg %p142
        $region18: #{tpu_custom_call.1} parent=11 // pred_check_branch
          %371 = sbr.rel (%p369) target = $region20
        $region19: #{tpu_custom_call.1} parent=11 // pred_region
          %s373 = ssub.s32 256, 256
          %374 = vsyncadd [#allocation10], %s373
          %s375 = sshll.u32 [#allocation9], 4
          %s376 = int_to_ptr.vmem [resolvable:$true] %s375
          %381 = dma.hbm_to_vmem [thread:$0]  %s3, 256, %s376, [#allocation10], 128, 128, 8
        $region20: #{tpu_custom_call.1} parent=11 // pred_fallthru
          _
        // Predicated region
        $region21: #{tpu_custom_call.1} parent=11 // pred_check
          %p382 = pneg %p163
        $region22: #{tpu_custom_call.1} parent=11 // pred_check_branch
          %384 = sbr.rel (%p382) target = $region24
        $region23: #{tpu_custom_call.1} parent=11 // pred_region
          %s386 = ssub.s32 512, 512
          %387 = vsyncadd [#allocation10], %s386
          %s388 = sshll.u32 [#allocation11], 4
          %s389 = int_to_ptr.vmem [resolvable:$true] %s388
          %394 = dma.hbm_to_vmem [thread:$0]  %s4, 512, %s389, [#allocation10], 128, 128, 8
        $region24: #{tpu_custom_call.1} parent=11 // pred_fallthru
          _
        // Predicated region
        $region25: #{tpu_custom_call.1} parent=11 // pred_check
          %p395 = pneg %p184
        $region26: #{tpu_custom_call.1} parent=11 // pred_check_branch
          %397 = sbr.rel (%p395) target = $region28
        $region27: #{tpu_custom_call.1} parent=11 // pred_region
          _
        $region28: #{tpu_custom_call.1} parent=11 // pred_fallthru
          _
        // Predicated region
        $region29: #{tpu_custom_call.1} parent=11 // pred_check
          %p398 = pneg %p205
        $region30: #{tpu_custom_call.1} parent=11 // pred_check_branch
          %400 = sbr.rel (%p398) target = $region32
        $region31: #{tpu_custom_call.1} parent=11 // pred_region
          %s402 = ssub.s32 512, 512
          %403 = vsyncadd [#allocation13], %s402
          %s404 = sshll.u32 [#allocation12], 4
          %s405 = int_to_ptr.vmem [resolvable:$true] %s404
          %410 = dma.hbm_to_vmem [thread:$0]  %s6, 512, %s405, [#allocation13], 128, 128, 8
        $region32: #{tpu_custom_call.1} parent=11 // pred_fallthru
          _
        // Predicated region
        $region33: #{tpu_custom_call.1} parent=11 // pred_check
          %p411 = pneg %p226
        $region34: #{tpu_custom_call.1} parent=11 // pred_check_branch
          %413 = sbr.rel (%p411) target = $region36
        $region35: #{tpu_custom_call.1} parent=11 // pred_region
          _
        $region36: #{tpu_custom_call.1} parent=11 // pred_fallthru
          _
        // Predicated region
        $region37: #{tpu_custom_call.1} parent=11 // pred_check
          %p414 = pneg %p247
        $region38: #{tpu_custom_call.1} parent=11 // pred_check_branch
          %416 = sbr.rel (%p414) target = $region40
        $region39: #{tpu_custom_call.1} parent=11 // pred_region
          %s418 = ssub.s32 512, 512
          %419 = vsyncadd [#allocation13], %s418
          %s420 = sshll.u32 [#allocation14], 4
          %s421 = int_to_ptr.vmem [resolvable:$true] %s420
          %426 = dma.hbm_to_vmem [thread:$0]  %s8, 512, %s421, [#allocation13], 128, 128, 8
        $region40: #{tpu_custom_call.1} parent=11 // pred_fallthru
          _
        // Predicated region
        $region41: #{tpu_custom_call.1} parent=11 // pred_check
          %p427 = pneg %p268
        $region42: #{tpu_custom_call.1} parent=11 // pred_check_branch
          %429 = sbr.rel (%p427) target = $region44
        $region43: #{tpu_custom_call.1} parent=11 // pred_region
          _
        $region44: #{tpu_custom_call.1} parent=11 // pred_fallthru
          _
        // Predicated region
        $region45: #{tpu_custom_call.1} parent=11 // pred_check
          %p430 = pneg %p289
        $region46: #{tpu_custom_call.1} parent=11 // pred_check_branch
          %432 = sbr.rel (%p430) target = $region48
        $region47: #{tpu_custom_call.1} parent=11 // pred_region
          _
        $region48: #{tpu_custom_call.1} parent=11 // pred_fallthru
          _
        // Predicated region
        $region49: #{tpu_custom_call.1} parent=11 // pred_check
          %p433 = pneg %p310
        $region50: #{tpu_custom_call.1} parent=11 // pred_check_branch
          %435 = sbr.rel (%p433) target = $region52
        $region51: #{tpu_custom_call.1} parent=11 // pred_region
          _
        $region52: #{tpu_custom_call.1} parent=11 // pred_fallthru
          _
      $region12: #{tpu_custom_call.1} parent=5 // pred_fallthru
        _
      %p436 = scmp.lt.s32.totalorder %s29, 2
      // Predicated region
      $region53: #{tpu_custom_call.1} parent=5 // pred_check
        %p437 = pneg %p436
      $region54: #{tpu_custom_call.1} parent=5 // pred_check_branch
        %439 = sbr.rel (%p437) target = $region56
      $region55: #{tpu_custom_call.1} parent=5 // pred_region
        // Predicated region
        $region57: #{tpu_custom_call.1} parent=55 // pred_check
          %p440 = pneg %p63
        $region58: #{tpu_custom_call.1} parent=55 // pred_check_branch
          %442 = sbr.rel (%p440) target = $region60
        $region59: #{tpu_custom_call.1} parent=55 // pred_region
          %s443 = sand.u32 %s53, 1
          %s444 = scalar_lea.sflag [#allocation4], %s443
          %s445 = sand.u32 %s53, 1
          %s446 = smul.addr %s445, 16
          %s447 = scalar_lea.vmem [#allocation3], %s446
          %s448 = smul.u32 2, %s37
          %s450 = ssub.s32 256, 256
          %451 = vsyncadd %s444, %s450
          %s452 = smul.addr %s36, 2
          %s453 = sadd.s32 %s448, %s452
          %s454 = smul.addr %s453, 128
          %s455 = scalar_lea.hbm %s0, %s454
          %s456 = sshll.u32 %s447, 4
          %s457 = int_to_ptr.vmem [resolvable:$true] %s456
          %462 = dma.hbm_to_vmem [thread:$0]  %s455, 256, %s457, %s444, 128, 128, 8
        $region60: #{tpu_custom_call.1} parent=55 // pred_fallthru
          _
        // Predicated region
        $region61: #{tpu_custom_call.1} parent=55 // pred_check
          %p463 = pneg %p89
        $region62: #{tpu_custom_call.1} parent=55 // pred_check_branch
          %465 = sbr.rel (%p463) target = $region64
        $region63: #{tpu_custom_call.1} parent=55 // pred_region
          %s466 = sand.u32 %s29, 1
          %s467 = scalar_lea.sflag [#allocation7], %s466
          %s468 = sand.u32 %s79, 1
          %s469 = smul.addr %s468, 16
          %s470 = scalar_lea.vmem [#allocation6], %s469
          %s472 = ssub.s32 256, 256
          %473 = vsyncadd %s467, %s472
          %s474 = smul.addr %s36, 2
          %s475 = smul.addr %s474, 128
          %s476 = scalar_lea.hbm %s1, %s475
          %s477 = sshll.u32 %s470, 4
          %s478 = int_to_ptr.vmem [resolvable:$true] %s477
          %483 = dma.hbm_to_vmem [thread:$0]  %s476, 256, %s478, %s467, 128, 128, 8
        $region64: #{tpu_custom_call.1} parent=55 // pred_fallthru
          _
      $region56: #{tpu_custom_call.1} parent=5 // pred_fallthru
        _
      %p484 = scmp.le.s32.totalorder 1, %s29
      %p485 = scmp.lt.s32.totalorder %s29, 3
      %p486 = pnand %p484, %p485
      %p487 = pneg %p486
      // Predicated region
      $region65: #{tpu_custom_call.1} parent=5 // pred_check
        _
      $region66: #{tpu_custom_call.1} parent=5 // pred_check_branch
        %489 = sbr.rel (%p486) target = $region68
      $region67: #{tpu_custom_call.1} parent=5 // pred_region
        %s490 = ssub.s32 %s29, 1
        %s491 = sand.u32 %s56, 1
        %s492 = scalar_lea.sflag [#allocation4], %s491
        %s493 = sand.u32 %s56, 1
        %s494 = smul.addr %s493, 16
        %s495 = scalar_lea.vmem [#allocation3], %s494
        // Predicated region
        $region69: #{tpu_custom_call.1} parent=67 // pred_check
          %p496 = pneg %p69
        $region70: #{tpu_custom_call.1} parent=67 // pred_check_branch
          %498 = sbr.rel (%p496) target = $region72
        $region71: #{tpu_custom_call.1} parent=67 // pred_region
          %499 = dma.done %s492, 256
        $region72: #{tpu_custom_call.1} parent=67 // pred_fallthru
          _
        %s500 = sand.u32 %s34, 1
        %s501 = scalar_lea.sflag [#allocation7], %s500
        %s502 = sand.u32 %s82, 1
        %s503 = smul.addr %s502, 16
        %s504 = scalar_lea.vmem [#allocation6], %s503
        // Predicated region
        $region73: #{tpu_custom_call.1} parent=67 // pred_check
          %p505 = pneg %p95
        $region74: #{tpu_custom_call.1} parent=67 // pred_check_branch
          %507 = sbr.rel (%p505) target = $region76
        $region75: #{tpu_custom_call.1} parent=67 // pred_region
          %508 = dma.done %s501, 256
        $region76: #{tpu_custom_call.1} parent=67 // pred_fallthru
          _
        // Predicated region
        $region77: #{tpu_custom_call.1} parent=67 // pred_check
          %p509 = pneg %p121
        $region78: #{tpu_custom_call.1} parent=67 // pred_check_branch
          %511 = sbr.rel (%p509) target = $region80
        $region79: #{tpu_custom_call.1} parent=67 // pred_region
          %512 = dma.done [#allocation7], 256
        $region80: #{tpu_custom_call.1} parent=67 // pred_fallthru
          _
        // Predicated region
        $region81: #{tpu_custom_call.1} parent=67 // pred_check
          %p513 = pneg %p142
        $region82: #{tpu_custom_call.1} parent=67 // pred_check_branch
          %515 = sbr.rel (%p513) target = $region84
        $region83: #{tpu_custom_call.1} parent=67 // pred_region
          %516 = dma.done [#allocation10], 256
        $region84: #{tpu_custom_call.1} parent=67 // pred_fallthru
          _
        // Predicated region
        $region85: #{tpu_custom_call.1} parent=67 // pred_check
          %p517 = pneg %p163
        $region86: #{tpu_custom_call.1} parent=67 // pred_check_branch
          %519 = sbr.rel (%p517) target = $region88
        $region87: #{tpu_custom_call.1} parent=67 // pred_region
          %520 = dma.done [#allocation10], 512
        $region88: #{tpu_custom_call.1} parent=67 // pred_fallthru
          _
        // Predicated region
        $region89: #{tpu_custom_call.1} parent=67 // pred_check
          %p521 = pneg %p205
        $region90: #{tpu_custom_call.1} parent=67 // pred_check_branch
          %523 = sbr.rel (%p521) target = $region92
        $region91: #{tpu_custom_call.1} parent=67 // pred_region
          %524 = dma.done [#allocation13], 512
        $region92: #{tpu_custom_call.1} parent=67 // pred_fallthru
          _
        // Predicated region
        $region93: #{tpu_custom_call.1} parent=67 // pred_check
          %p525 = pneg %p247
        $region94: #{tpu_custom_call.1} parent=67 // pred_check_branch
          %527 = sbr.rel (%p525) target = $region96
        $region95: #{tpu_custom_call.1} parent=67 // pred_region
          %528 = dma.done [#allocation13], 512
        $region96: #{tpu_custom_call.1} parent=67 // pred_fallthru
          _
        %s529 = sand.u32 %s56, 1
        %s530 = scalar_lea.sflag [#allocation4], %s529
        %s531 = sand.u32 %s56, 1
        %s532 = smul.addr %s531, 16
        %s533 = scalar_lea.vmem [#allocation3], %s532
        %p534 = pneg %p69
        %p535 = pneg %p66
        %s536 = sand.u32 %s34, 1
        %s537 = scalar_lea.sflag [#allocation7], %s536
        %s538 = sand.u32 %s82, 1
        %s539 = smul.addr %s538, 16
        %s540 = scalar_lea.vmem [#allocation6], %s539
        %p541 = pneg %p95
        %p542 = pneg %p92
        %p543 = pneg %p121
        %p544 = pneg %p118
        %p545 = pneg %p142
        %p546 = pneg %p139
        %p547 = pneg %p163
        %p548 = pneg %p160
        %p549 = pneg %p184
        %p550 = pneg %p181
        %p551 = pneg %p205
        %p552 = pneg %p202
        %p553 = pneg %p226
        %p554 = pneg %p223
        %p555 = pneg %p247
        %p556 = pneg %p244
        %p557 = pneg %p268
        %p558 = pneg %p265
        %p559 = pneg %p289
        %p560 = pneg %p286
        %p561 = pneg %p310
        %p562 = pneg %p307
        %p563 = pneg %p338
        %p564 = pneg %p335
        %s565 = sand.u32 %s325, 1
        %s566 = scalar_lea.sflag [#allocation5], %s565
        %s567 = sand.u32 %s325, 1
        %s568 = smul.addr %s567, 16
        %s569 = scalar_lea.vmem [#allocation15], %s568
        %s570 = smul.u32 2, %s39
        %s571 = smul.u32 2, %s39
        %s572 = smul.u32 2, %s39
        %v573 = vld [vmem:[%s495] sm:$0xff]
        %v574 = vld [vmem:[%s495 + $0x8] sm:$0xff]
        %v575 = vld [vmem:[#allocation8] sm:$0xff]
        %v576 = vld [vmem:[#allocation8 + $0x8] sm:$0xff]
        %v577 = vadd.f32 %v573, %v575
        %v578 = vadd.f32 %v574, %v576
        %v579 = vld [vmem:[%s504] sm:$0xff]
        %v580 = vld [vmem:[%s504 + $0x8] sm:$0xff]
        %v581 = vld [vmem:[#allocation9] sm:$0xff]
        %v582 = vld [vmem:[#allocation9 + $0x8] sm:$0xff]
        %v583 = vadd.f32 %v579, %v581
        %v584 = vadd.f32 %v580, %v582
        %v585 = vld [vmem:[#allocation11] sm:$0xff]
        %v586 = vld [vmem:[#allocation11 + $0x8] sm:$0xff]
        %v587 = vld [vmem:[#allocation11 + $0x10] sm:$0xff]
        %v588 = vld [vmem:[#allocation11 + $0x18] sm:$0xff]
        %v589 = vld [vmem:[%s5] sm:$0x1]
        %v591 = vlaneseq
        %v592 = vshrl.u32 %v591, 7
        %v593 = vsub.s32 0, %v592
        %v594 = vrot.slane %v589, %v593
        %vm596 = vcmask 261120
        %v598 = vsel %vm596, %v577, 0
        %v601 = vsel %vm596, %v578, 0
        %603 = vmatprep.subr.mxu0 0.0
        %604 = vmatpush1.msra.mxu0 %v585
        %605 = vmatprep.subr.mxu0 0.0
        %606 = vmatpush1.msra.mxu0 %v586
        %607 = vmatprep.subr.mxu0 0.0
        %608 = vmatpush1.msra.mxu0 %v587
        %609 = vmatprep.subr.mxu0 0.0
        %610 = vmatpush1.msra.mxu0 %v588
        %611 = vmatprep.subr.mxu0 0.0
        %612 = vmatpush1.msra.mxu0 0.0
        %613 = vmatprep.subr.mxu0 0.0
        %614 = vmatpush1.msra.mxu0 0.0
        %615 = vmatprep.subr.mxu0 0.0
        %616 = vmatpush1.msra.mxu0 0.0
        %617 = vmatprep.subr.mxu0 0.0
        %618 = vmatpush1.msra.mxu0 0.0
        %619 = vmatprep.subr.mxu0 0.0
        %620 = vmatpush1.msra.mxu0 0.0
        %621 = vmatprep.subr.mxu0 0.0
        %622 = vmatpush1.msra.mxu0 0.0
        %623 = vmatprep.subr.mxu0 0.0
        %624 = vmatpush1.msra.mxu0 0.0
        %625 = vmatprep.subr.mxu0 0.0
        %626 = vmatpush1.msra.mxu0 0.0
        %627 = vmatprep.subr.mxu0 0.0
        %628 = vmatpush1.msra.mxu0 0.0
        %629 = vmatprep.subr.mxu0 0.0
        %630 = vmatpush1.msra.mxu0 0.0
        %631 = vmatprep.subr.mxu0 0.0
        %632 = vmatpush1.msra.mxu0 0.0
        %633 = vmatprep.subr.mxu0 0.0
        %634 = vmatpush1.msra.mxu0 0.0
        %635 = vmatprep.subr.mxu0 0.0
        %636 = vmatpush1.msra.mxu0 0.0
        %637 = vmatprep.subr.mxu0 0.0
        %638 = vmatpush1.msra.mxu0 0.0
        %639 = vmatprep.subr.mxu0 0.0
        %640 = vmatpush1.msra.mxu0 0.0
        %641 = vmatprep.subr.mxu0 0.0
        %642 = vmatpush1.msra.mxu0 0.0
        %643 = vmatprep.subr.mxu0 0.0
        %644 = vmatpush1.msra.mxu0 0.0
        %645 = vmatprep.subr.mxu0 0.0
        %646 = vmatpush1.msra.mxu0 0.0
        %647 = vmatprep.subr.mxu0 0.0
        %648 = vmatpush1.msra.mxu0 0.0
        %649 = vmatprep.subr.mxu0 0.0
        %650 = vmatpush1.msra.mxu0 0.0
        %651 = vmatprep.subr.mxu0 0.0
        %652 = vmatpush1.msra.mxu0 0.0
        %653 = vmatprep.subr.mxu0 0.0
        %654 = vmatpush1.msra.mxu0 0.0
        %655 = vmatprep.subr.mxu0 0.0
        %656 = vmatpush1.msra.mxu0 0.0
        %657 = vmatprep.subr.mxu0 0.0
        %658 = vmatpush1.msra.mxu0 0.0
        %659 = vmatprep.subr.mxu0 0.0
        %660 = vmatpush1.msra.mxu0 0.0
        %661 = vmatprep.subr.mxu0 0.0
        %662 = vmatpush1.msra.mxu0 0.0
        %663 = vmatprep.subr.mxu0 0.0
        %664 = vmatpush1.msra.mxu0 0.0
        %665 = vmatprep.subr.mxu0 0.0
        %666 = vmatpush1.msra.mxu0 0.0
        %667 = vmatprep.mubr.f32.mxu0 0.0
        %668 = vmatmul.mubr.f32.gmra.mrb[0].mxu0 %v598
        %v669 = vpop.f32.mrb[0].mxu0
        %v670 = vadd.f32 %v594, %v669
        %v671 = vpop.f32.mrb[0].mxu0
        %672 = vmatprep.mubr.f32.mxu0 0.0
        %673 = vmatmul.mubr.f32.gmra.mrb[0].mxu0 %v601
        %v674 = vpop.f32.mrb[0].mxu0
        %v675 = vadd.f32 %v594, %v674
        %v676 = vpop.f32.mrb[0].mxu0
        %677 = vdwg.mxu0
        %v678 = vld [vmem:[#allocation12] sm:$0xff]
        %v679 = vld [vmem:[#allocation12 + $0x8] sm:$0xff]
        %v680 = vld [vmem:[#allocation12 + $0x10] sm:$0xff]
        %v681 = vld [vmem:[#allocation12 + $0x18] sm:$0xff]
        %v682 = vld [vmem:[%s7] sm:$0x1]
        %v684 = vlaneseq
        %v685 = vshrl.u32 %v684, 7
        %v686 = vsub.s32 0, %v685
        %v687 = vrot.slane %v682, %v686
        %v690 = vsel %vm596, %v583, 0
        %v693 = vsel %vm596, %v584, 0
        %695 = vmatprep.subr.mxu0 0.0
        %696 = vmatpush1.msra.mxu0 %v678
        %697 = vmatprep.subr.mxu0 0.0
        %698 = vmatpush1.msra.mxu0 %v679
        %699 = vmatprep.subr.mxu0 0.0
        %700 = vmatpush1.msra.mxu0 %v680
        %701 = vmatprep.subr.mxu0 0.0
        %702 = vmatpush1.msra.mxu0 %v681
        %703 = vmatprep.subr.mxu0 0.0
        %704 = vmatpush1.msra.mxu0 0.0
        %705 = vmatprep.subr.mxu0 0.0
        %706 = vmatpush1.msra.mxu0 0.0
        %707 = vmatprep.subr.mxu0 0.0
        %708 = vmatpush1.msra.mxu0 0.0
        %709 = vmatprep.subr.mxu0 0.0
        %710 = vmatpush1.msra.mxu0 0.0
        %711 = vmatprep.subr.mxu0 0.0
        %712 = vmatpush1.msra.mxu0 0.0
        %713 = vmatprep.subr.mxu0 0.0
        %714 = vmatpush1.msra.mxu0 0.0
        %715 = vmatprep.subr.mxu0 0.0
        %716 = vmatpush1.msra.mxu0 0.0
        %717 = vmatprep.subr.mxu0 0.0
        %718 = vmatpush1.msra.mxu0 0.0
        %719 = vmatprep.subr.mxu0 0.0
        %720 = vmatpush1.msra.mxu0 0.0
        %721 = vmatprep.subr.mxu0 0.0
        %722 = vmatpush1.msra.mxu0 0.0
        %723 = vmatprep.subr.mxu0 0.0
        %724 = vmatpush1.msra.mxu0 0.0
        %725 = vmatprep.subr.mxu0 0.0
        %726 = vmatpush1.msra.mxu0 0.0
        %727 = vmatprep.subr.mxu0 0.0
        %728 = vmatpush1.msra.mxu0 0.0
        %729 = vmatprep.subr.mxu0 0.0
        %730 = vmatpush1.msra.mxu0 0.0
        %731 = vmatprep.subr.mxu0 0.0
        %732 = vmatpush1.msra.mxu0 0.0
        %733 = vmatprep.subr.mxu0 0.0
        %734 = vmatpush1.msra.mxu0 0.0
        %735 = vmatprep.subr.mxu0 0.0
        %736 = vmatpush1.msra.mxu0 0.0
        %737 = vmatprep.subr.mxu0 0.0
        %738 = vmatpush1.msra.mxu0 0.0
        %739 = vmatprep.subr.mxu0 0.0
        %740 = vmatpush1.msra.mxu0 0.0
        %741 = vmatprep.subr.mxu0 0.0
        %742 = vmatpush1.msra.mxu0 0.0
        %743 = vmatprep.subr.mxu0 0.0
        %744 = vmatpush1.msra.mxu0 0.0
        %745 = vmatprep.subr.mxu0 0.0
        %746 = vmatpush1.msra.mxu0 0.0
        %747 = vmatprep.subr.mxu0 0.0
        %748 = vmatpush1.msra.mxu0 0.0
        %749 = vmatprep.subr.mxu0 0.0
        %750 = vmatpush1.msra.mxu0 0.0
        %751 = vmatprep.subr.mxu0 0.0
        %752 = vmatpush1.msra.mxu0 0.0
        %753 = vmatprep.subr.mxu0 0.0
        %754 = vmatpush1.msra.mxu0 0.0
        %755 = vmatprep.subr.mxu0 0.0
        %756 = vmatpush1.msra.mxu0 0.0
        %757 = vmatprep.subr.mxu0 0.0
        %758 = vmatpush1.msra.mxu0 0.0
        %759 = vmatprep.mubr.f32.mxu0 0.0
        %760 = vmatmul.mubr.f32.gmra.mrb[0].mxu0 %v690
        %v761 = vpop.f32.mrb[0].mxu0
        %v762 = vadd.f32 %v687, %v761
        %v763 = vpop.f32.mrb[0].mxu0
        %764 = vmatprep.mubr.f32.mxu0 0.0
        %765 = vmatmul.mubr.f32.gmra.mrb[0].mxu0 %v693
        %v766 = vpop.f32.mrb[0].mxu0
        %v767 = vadd.f32 %v687, %v766
        %v768 = vpop.f32.mrb[0].mxu0
        %769 = vdwg.mxu0
        %v770 = vld [vmem:[#allocation14] sm:$0xff]
        %v771 = vld [vmem:[#allocation14 + $0x8] sm:$0xff]
        %v772 = vld [vmem:[#allocation14 + $0x10] sm:$0xff]
        %v773 = vld [vmem:[#allocation14 + $0x18] sm:$0xff]
        %v774 = vld [vmem:[%s9] sm:$0x1]
        %v776 = vlaneseq
        %v777 = vshrl.u32 %v776, 7
        %v778 = vsub.s32 0, %v777
        %v779 = vrot.slane %v774, %v778
        %781 = vmatprep.subr.mxu0 0.0
        %782 = vmatpush1.msra.mxu0 %v770
        %783 = vmatprep.subr.mxu0 0.0
        %784 = vmatpush1.msra.mxu0 %v771
        %785 = vmatprep.subr.mxu0 0.0
        %786 = vmatpush1.msra.mxu0 %v772
        %787 = vmatprep.subr.mxu0 0.0
        %788 = vmatpush1.msra.mxu0 %v773
        %789 = vmatprep.subr.mxu0 0.0
        %790 = vmatpush1.msra.mxu0 0.0
        %791 = vmatprep.subr.mxu0 0.0
        %792 = vmatpush1.msra.mxu0 0.0
        %793 = vmatprep.subr.mxu0 0.0
        %794 = vmatpush1.msra.mxu0 0.0
        %795 = vmatprep.subr.mxu0 0.0
        %796 = vmatpush1.msra.mxu0 0.0
        %797 = vmatprep.subr.mxu0 0.0
        %798 = vmatpush1.msra.mxu0 0.0
        %799 = vmatprep.subr.mxu0 0.0
        %800 = vmatpush1.msra.mxu0 0.0
        %801 = vmatprep.subr.mxu0 0.0
        %802 = vmatpush1.msra.mxu0 0.0
        %803 = vmatprep.subr.mxu0 0.0
        %804 = vmatpush1.msra.mxu0 0.0
        %805 = vmatprep.subr.mxu0 0.0
        %806 = vmatpush1.msra.mxu0 0.0
        %807 = vmatprep.subr.mxu0 0.0
        %808 = vmatpush1.msra.mxu0 0.0
        %809 = vmatprep.subr.mxu0 0.0
        %810 = vmatpush1.msra.mxu0 0.0
        %811 = vmatprep.subr.mxu0 0.0
        %812 = vmatpush1.msra.mxu0 0.0
        %813 = vmatprep.subr.mxu0 0.0
        %814 = vmatpush1.msra.mxu0 0.0
        %815 = vmatprep.subr.mxu0 0.0
        %816 = vmatpush1.msra.mxu0 0.0
        %817 = vmatprep.subr.mxu0 0.0
        %818 = vmatpush1.msra.mxu0 0.0
        %819 = vmatprep.subr.mxu0 0.0
        %820 = vmatpush1.msra.mxu0 0.0
        %821 = vmatprep.subr.mxu0 0.0
        %822 = vmatpush1.msra.mxu0 0.0
        %823 = vmatprep.subr.mxu0 0.0
        %824 = vmatpush1.msra.mxu0 0.0
        %825 = vmatprep.subr.mxu0 0.0
        %826 = vmatpush1.msra.mxu0 0.0
        %827 = vmatprep.subr.mxu0 0.0
        %828 = vmatpush1.msra.mxu0 0.0
        %829 = vmatprep.subr.mxu0 0.0
        %830 = vmatpush1.msra.mxu0 0.0
        %831 = vmatprep.subr.mxu0 0.0
        %832 = vmatpush1.msra.mxu0 0.0
        %833 = vmatprep.subr.mxu0 0.0
        %834 = vmatpush1.msra.mxu0 0.0
        %835 = vmatprep.subr.mxu0 0.0
        %836 = vmatpush1.msra.mxu0 0.0
        %837 = vmatprep.subr.mxu0 0.0
        %838 = vmatpush1.msra.mxu0 0.0
        %839 = vmatprep.subr.mxu0 0.0
        %840 = vmatpush1.msra.mxu0 0.0
        %841 = vmatprep.subr.mxu0 0.0
        %842 = vmatpush1.msra.mxu0 0.0
        %843 = vmatprep.subr.mxu0 0.0
        %844 = vmatpush1.msra.mxu0 0.0
        %845 = vmatprep.mubr.f32.mxu0 0.0
        %846 = vmatmul.mubr.f32.gmra.mrb[0].mxu0 %v690
        %v847 = vpop.f32.mrb[0].mxu0
        %v848 = vadd.f32 %v779, %v847
        %v849 = vpop.f32.mrb[0].mxu0
        %850 = vmatprep.mubr.f32.mxu0 0.0
        %851 = vmatmul.mubr.f32.gmra.mrb[0].mxu0 %v693
        %v852 = vpop.f32.mrb[0].mxu0
        %v853 = vadd.f32 %v779, %v852
        %v854 = vpop.f32.mrb[0].mxu0
        %855 = vdwg.mxu0
        %vm856 = vcmask 64512
        %v858 = vsel %vm856, %v670, 0
        %v861 = vsel %vm856, %v675, 0
        %v864 = vsel %vm856, %v762, 0
        %v867 = vsel %vm856, %v767, 0
        %869 = vmatprep.subr.mxu0 0.0
        %870 = vmatpush1.xpose.msra.mxu0 %v864
        %871 = vmatprep.subr.mxu0 0.0
        %872 = vmatpush1.xpose.msra.mxu0 %v867
        %873 = vmatprep.subr.mxu0 0.0
        %874 = vmatpush1.xpose.msra.mxu0 0.0
        %875 = vmatprep.subr.mxu0 0.0
        %876 = vmatpush1.xpose.msra.mxu0 0.0
        %877 = vmatprep.subr.mxu0 0.0
        %878 = vmatpush1.xpose.msra.mxu0 0.0
        %879 = vmatprep.subr.mxu0 0.0
        %880 = vmatpush1.xpose.msra.mxu0 0.0
        %881 = vmatprep.subr.mxu0 0.0
        %882 = vmatpush1.xpose.msra.mxu0 0.0
        %883 = vmatprep.subr.mxu0 0.0
        %884 = vmatpush1.xpose.msra.mxu0 0.0
        %885 = vmatprep.subr.mxu0 0.0
        %886 = vmatpush1.xpose.msra.mxu0 0.0
        %887 = vmatprep.subr.mxu0 0.0
        %888 = vmatpush1.xpose.msra.mxu0 0.0
        %889 = vmatprep.subr.mxu0 0.0
        %890 = vmatpush1.xpose.msra.mxu0 0.0
        %891 = vmatprep.subr.mxu0 0.0
        %892 = vmatpush1.xpose.msra.mxu0 0.0
        %893 = vmatprep.subr.mxu0 0.0
        %894 = vmatpush1.xpose.msra.mxu0 0.0
        %895 = vmatprep.subr.mxu0 0.0
        %896 = vmatpush1.xpose.msra.mxu0 0.0
        %897 = vmatprep.subr.mxu0 0.0
        %898 = vmatpush1.xpose.msra.mxu0 0.0
        %899 = vmatprep.subr.mxu0 0.0
        %900 = vmatpush1.xpose.msra.mxu0 0.0
        %901 = vmatprep.subr.mxu0 0.0
        %902 = vmatpush1.xpose.msra.mxu0 0.0
        %903 = vmatprep.subr.mxu0 0.0
        %904 = vmatpush1.xpose.msra.mxu0 0.0
        %905 = vmatprep.subr.mxu0 0.0
        %906 = vmatpush1.xpose.msra.mxu0 0.0
        %907 = vmatprep.subr.mxu0 0.0
        %908 = vmatpush1.xpose.msra.mxu0 0.0
        %909 = vmatprep.subr.mxu0 0.0
        %910 = vmatpush1.xpose.msra.mxu0 0.0
        %911 = vmatprep.subr.mxu0 0.0
        %912 = vmatpush1.xpose.msra.mxu0 0.0
        %913 = vmatprep.subr.mxu0 0.0
        %914 = vmatpush1.xpose.msra.mxu0 0.0
        %915 = vmatprep.subr.mxu0 0.0
        %916 = vmatpush1.xpose.msra.mxu0 0.0
        %917 = vmatprep.subr.mxu0 0.0
        %918 = vmatpush1.xpose.msra.mxu0 0.0
        %919 = vmatprep.subr.mxu0 0.0
        %920 = vmatpush1.xpose.msra.mxu0 0.0
        %921 = vmatprep.subr.mxu0 0.0
        %922 = vmatpush1.xpose.msra.mxu0 0.0
        %923 = vmatprep.subr.mxu0 0.0
        %924 = vmatpush1.xpose.msra.mxu0 0.0
        %925 = vmatprep.subr.mxu0 0.0
        %926 = vmatpush1.xpose.msra.mxu0 0.0
        %927 = vmatprep.subr.mxu0 0.0
        %928 = vmatpush1.xpose.msra.mxu0 0.0
        %929 = vmatprep.subr.mxu0 0.0
        %930 = vmatpush1.xpose.msra.mxu0 0.0
        %931 = vmatprep.subr.mxu0 0.0
        %932 = vmatpush1.xpose.msra.mxu0 0.0
        %933 = vmatprep.mubr.f32.mxu0 0.0
        %934 = vmatmul.mubr.f32.gmra.mrb[0].mxu0 %v858
        %v935 = vpop.f32.mrb[0].mxu0
        %v936 = vadd.f32 0.0, %v935
        %v937 = vpop.f32.mrb[0].mxu0
        %938 = vmatprep.mubr.f32.mxu0 0.0
        %939 = vmatmul.mubr.f32.gmra.mrb[0].mxu0 %v861
        %v940 = vpop.f32.mrb[0].mxu0
        %v941 = vadd.f32 0.0, %v940
        %v942 = vpop.f32.mrb[0].mxu0
        %943 = vdwg.mxu0
        %v944 = vmul.f32 %v936, 0.35355338
        %v945 = vmul.f32 %v941, 0.35355338
        %vm946 = vcmask 130048
        %v947 = vsel %vm946, %v944, -inf
        %948 = vmax.xlane.f32.xlu0 %v947
        %v949 = vpop.xlane.xlu0 %948
        %v950 = vsel %vm946, %v945, -inf
        %951 = vmax.xlane.f32.xlu0 %v950
        %v952 = vpop.xlane.xlu0 %951
        %v953 = vsub.f32 %v944, %v949
        %v954 = vsub.f32 %v945, %v952
        %v955 = vmul.f32 %v953, 1.442695
        %v956 = vpow.pop %v955
        %v957 = vmul.f32 %v954, 1.442695
        %v958 = vpow.pop %v957
        %v959 = vsel %vm946, %v956, 0.0
        %960 = vadd.xlane.f32.xlu0 %v959
        %v961 = vpop.xlane.xlu0 %960
        %v962 = vsel %vm946, %v958, 0.0
        %963 = vadd.xlane.f32.xlu0 %v962
        %v964 = vpop.xlane.xlu0 %963
        %v966 = vsel %vm946, %v956, 0
        %v969 = vsel %vm946, %v958, 0
        %971 = vmatprep.subr.mxu0 0.0
        %972 = vmatpush1.msra.mxu0 %v848
        %973 = vmatprep.subr.mxu0 0.0
        %974 = vmatpush1.msra.mxu0 %v853
        %975 = vmatprep.subr.mxu0 0.0
        %976 = vmatpush1.msra.mxu0 0.0
        %977 = vmatprep.subr.mxu0 0.0
        %978 = vmatpush1.msra.mxu0 0.0
        %979 = vmatprep.subr.mxu0 0.0
        %980 = vmatpush1.msra.mxu0 0.0
        %981 = vmatprep.subr.mxu0 0.0
        %982 = vmatpush1.msra.mxu0 0.0
        %983 = vmatprep.subr.mxu0 0.0
        %984 = vmatpush1.msra.mxu0 0.0
        %985 = vmatprep.subr.mxu0 0.0
        %986 = vmatpush1.msra.mxu0 0.0
        %987 = vmatprep.subr.mxu0 0.0
        %988 = vmatpush1.msra.mxu0 0.0
        %989 = vmatprep.subr.mxu0 0.0
        %990 = vmatpush1.msra.mxu0 0.0
        %991 = vmatprep.subr.mxu0 0.0
        %992 = vmatpush1.msra.mxu0 0.0
        %993 = vmatprep.subr.mxu0 0.0
        %994 = vmatpush1.msra.mxu0 0.0
        %995 = vmatprep.subr.mxu0 0.0
        %996 = vmatpush1.msra.mxu0 0.0
        %997 = vmatprep.subr.mxu0 0.0
        %998 = vmatpush1.msra.mxu0 0.0
        %999 = vmatprep.subr.mxu0 0.0
        %1000 = vmatpush1.msra.mxu0 0.0
        %1001 = vmatprep.subr.mxu0 0.0
        %1002 = vmatpush1.msra.mxu0 0.0
        %1003 = vmatprep.subr.mxu0 0.0
        %1004 = vmatpush1.msra.mxu0 0.0
        %1005 = vmatprep.subr.mxu0 0.0
        %1006 = vmatpush1.msra.mxu0 0.0
        %1007 = vmatprep.subr.mxu0 0.0
        %1008 = vmatpush1.msra.mxu0 0.0
        %1009 = vmatprep.subr.mxu0 0.0
        %1010 = vmatpush1.msra.mxu0 0.0
        %1011 = vmatprep.subr.mxu0 0.0
        %1012 = vmatpush1.msra.mxu0 0.0
        %1013 = vmatprep.subr.mxu0 0.0
        %1014 = vmatpush1.msra.mxu0 0.0
        %1015 = vmatprep.subr.mxu0 0.0
        %1016 = vmatpush1.msra.mxu0 0.0
        %1017 = vmatprep.subr.mxu0 0.0
        %1018 = vmatpush1.msra.mxu0 0.0
        %1019 = vmatprep.subr.mxu0 0.0
        %1020 = vmatpush1.msra.mxu0 0.0
        %1021 = vmatprep.subr.mxu0 0.0
        %1022 = vmatpush1.msra.mxu0 0.0
        %1023 = vmatprep.subr.mxu0 0.0
        %1024 = vmatpush1.msra.mxu0 0.0
        %1025 = vmatprep.subr.mxu0 0.0
        %1026 = vmatpush1.msra.mxu0 0.0
        %1027 = vmatprep.subr.mxu0 0.0
        %1028 = vmatpush1.msra.mxu0 0.0
        %1029 = vmatprep.subr.mxu0 0.0
        %1030 = vmatpush1.msra.mxu0 0.0
        %1031 = vmatprep.subr.mxu0 0.0
        %1032 = vmatpush1.msra.mxu0 0.0
        %1033 = vmatprep.subr.mxu0 0.0
        %1034 = vmatpush1.msra.mxu0 0.0
        %1035 = vmatprep.mubr.f32.mxu0 0.0
        %1036 = vmatmul.mubr.f32.gmra.mrb[0].mxu0 %v966
        %v1037 = vpop.f32.mrb[0].mxu0
        %v1038 = vadd.f32 0.0, %v1037
        %v1039 = vpop.f32.mrb[0].mxu0
        %1040 = vmatprep.mubr.f32.mxu0 0.0
        %1041 = vmatmul.mubr.f32.gmra.mrb[0].mxu0 %v969
        %v1042 = vpop.f32.mrb[0].mxu0
        %v1043 = vadd.f32 0.0, %v1042
        %v1044 = vpop.f32.mrb[0].mxu0
        %1045 = vdwg.mxu0
        %v1046 = vrcp.pop %v961
        %v1047 = vrcp.pop %v964
        %v1048 = vmul.f32 %v1038, %v1046
        %v1049 = vmul.f32 %v1043, %v1047
        %1050 = vst.msk [vmem:[#allocation2] sm:$0xff] %vm856, %v1048
        %1051 = vst.msk [vmem:[#allocation2 + $0x8] sm:$0xff] %vm856, %v1049
        %1052 = vrot.lane.b32.xlu0 %v670, 120
        %v1053 = vpop.permute.xlu0 %1052
        %1054 = vrot.lane.b32.xlu0 %v675, 120
        %v1055 = vpop.permute.xlu0 %1054
        %1056 = vrot.lane.b32.xlu0 %v762, 120
        %v1057 = vpop.permute.xlu0 %1056
        %1058 = vrot.lane.b32.xlu0 %v767, 120
        %v1059 = vpop.permute.xlu0 %1058
        %v1060 = vsel %vm856, %v1053, 0
        %v1062 = vsel %vm856, %v1055, 0
        %v1064 = vsel %vm856, %v1057, 0
        %v1066 = vsel %vm856, %v1059, 0
        %1068 = vmatprep.subr.mxu0 0.0
        %1069 = vmatpush1.xpose.msra.mxu0 %v1064
        %1070 = vmatprep.subr.mxu0 0.0
        %1071 = vmatpush1.xpose.msra.mxu0 %v1066
        %1072 = vmatprep.subr.mxu0 0.0
        %1073 = vmatpush1.xpose.msra.mxu0 0.0
        %1074 = vmatprep.subr.mxu0 0.0
        %1075 = vmatpush1.xpose.msra.mxu0 0.0
        %1076 = vmatprep.subr.mxu0 0.0
        %1077 = vmatpush1.xpose.msra.mxu0 0.0
        %1078 = vmatprep.subr.mxu0 0.0
        %1079 = vmatpush1.xpose.msra.mxu0 0.0
        %1080 = vmatprep.subr.mxu0 0.0
        %1081 = vmatpush1.xpose.msra.mxu0 0.0
        %1082 = vmatprep.subr.mxu0 0.0
        %1083 = vmatpush1.xpose.msra.mxu0 0.0
        %1084 = vmatprep.subr.mxu0 0.0
        %1085 = vmatpush1.xpose.msra.mxu0 0.0
        %1086 = vmatprep.subr.mxu0 0.0
        %1087 = vmatpush1.xpose.msra.mxu0 0.0
        %1088 = vmatprep.subr.mxu0 0.0
        %1089 = vmatpush1.xpose.msra.mxu0 0.0
        %1090 = vmatprep.subr.mxu0 0.0
        %1091 = vmatpush1.xpose.msra.mxu0 0.0
        %1092 = vmatprep.subr.mxu0 0.0
        %1093 = vmatpush1.xpose.msra.mxu0 0.0
        %1094 = vmatprep.subr.mxu0 0.0
        %1095 = vmatpush1.xpose.msra.mxu0 0.0
        %1096 = vmatprep.subr.mxu0 0.0
        %1097 = vmatpush1.xpose.msra.mxu0 0.0
        %1098 = vmatprep.subr.mxu0 0.0
        %1099 = vmatpush1.xpose.msra.mxu0 0.0
        %1100 = vmatprep.subr.mxu0 0.0
        %1101 = vmatpush1.xpose.msra.mxu0 0.0
        %1102 = vmatprep.subr.mxu0 0.0
        %1103 = vmatpush1.xpose.msra.mxu0 0.0
        %1104 = vmatprep.subr.mxu0 0.0
        %1105 = vmatpush1.xpose.msra.mxu0 0.0
        %1106 = vmatprep.subr.mxu0 0.0
        %1107 = vmatpush1.xpose.msra.mxu0 0.0
        %1108 = vmatprep.subr.mxu0 0.0
        %1109 = vmatpush1.xpose.msra.mxu0 0.0
        %1110 = vmatprep.subr.mxu0 0.0
        %1111 = vmatpush1.xpose.msra.mxu0 0.0
        %1112 = vmatprep.subr.mxu0 0.0
        %1113 = vmatpush1.xpose.msra.mxu0 0.0
        %1114 = vmatprep.subr.mxu0 0.0
        %1115 = vmatpush1.xpose.msra.mxu0 0.0
        %1116 = vmatprep.subr.mxu0 0.0
        %1117 = vmatpush1.xpose.msra.mxu0 0.0
        %1118 = vmatprep.subr.mxu0 0.0
        %1119 = vmatpush1.xpose.msra.mxu0 0.0
        %1120 = vmatprep.subr.mxu0 0.0
        %1121 = vmatpush1.xpose.msra.mxu0 0.0
        %1122 = vmatprep.subr.mxu0 0.0
        %1123 = vmatpush1.xpose.msra.mxu0 0.0
        %1124 = vmatprep.subr.mxu0 0.0
        %1125 = vmatpush1.xpose.msra.mxu0 0.0
        %1126 = vmatprep.subr.mxu0 0.0
        %1127 = vmatpush1.xpose.msra.mxu0 0.0
        %1128 = vmatprep.subr.mxu0 0.0
        %1129 = vmatpush1.xpose.msra.mxu0 0.0
        %1130 = vmatprep.subr.mxu0 0.0
        %1131 = vmatpush1.xpose.msra.mxu0 0.0
        %1132 = vmatprep.mubr.f32.mxu0 0.0
        %1133 = vmatmul.mubr.f32.gmra.mrb[0].mxu0 %v1060
        %v1134 = vpop.f32.mrb[0].mxu0
        %v1135 = vadd.f32 0.0, %v1134
        %v1136 = vpop.f32.mrb[0].mxu0
        %1137 = vmatprep.mubr.f32.mxu0 0.0
        %1138 = vmatmul.mubr.f32.gmra.mrb[0].mxu0 %v1062
        %v1139 = vpop.f32.mrb[0].mxu0
        %v1140 = vadd.f32 0.0, %v1139
        %v1141 = vpop.f32.mrb[0].mxu0
        %1142 = vdwg.mxu0
        %v1143 = vmul.f32 %v1135, 0.35355338
        %v1144 = vmul.f32 %v1140, 0.35355338
        %v1145 = vsel %vm946, %v1143, -inf
        %1146 = vmax.xlane.f32.xlu0 %v1145
        %v1147 = vpop.xlane.xlu0 %1146
        %v1148 = vsel %vm946, %v1144, -inf
        %1149 = vmax.xlane.f32.xlu0 %v1148
        %v1150 = vpop.xlane.xlu0 %1149
        %v1151 = vsub.f32 %v1143, %v1147
        %v1152 = vsub.f32 %v1144, %v1150
        %v1153 = vmul.f32 %v1151, 1.442695
        %v1154 = vpow.pop %v1153
        %v1155 = vmul.f32 %v1152, 1.442695
        %v1156 = vpow.pop %v1155
        %v1157 = vsel %vm946, %v1154, 0.0
        %1158 = vadd.xlane.f32.xlu0 %v1157
        %v1159 = vpop.xlane.xlu0 %1158
        %v1160 = vsel %vm946, %v1156, 0.0
        %1161 = vadd.xlane.f32.xlu0 %v1160
        %v1162 = vpop.xlane.xlu0 %1161
        %1165 = vrot.lane.b32.xlu0 %v848, 120
        %v1166 = vpop.permute.xlu0 %1165
        %1167 = vrot.lane.b32.xlu0 %v853, 120
        %v1168 = vpop.permute.xlu0 %1167
        %v1172 = vsel %vm946, %v1154, 0
        %v1175 = vsel %vm946, %v1156, 0
        %1177 = vmatprep.subr.mxu0 0.0
        %1178 = vmatpush1.msra.mxu0 %v1166
        %1179 = vmatprep.subr.mxu0 0.0
        %1180 = vmatpush1.msra.mxu0 %v1168
        %1181 = vmatprep.subr.mxu0 0.0
        %1182 = vmatpush1.msra.mxu0 0.0
        %1183 = vmatprep.subr.mxu0 0.0
        %1184 = vmatpush1.msra.mxu0 0.0
        %1185 = vmatprep.subr.mxu0 0.0
        %1186 = vmatpush1.msra.mxu0 0.0
        %1187 = vmatprep.subr.mxu0 0.0
        %1188 = vmatpush1.msra.mxu0 0.0
        %1189 = vmatprep.subr.mxu0 0.0
        %1190 = vmatpush1.msra.mxu0 0.0
        %1191 = vmatprep.subr.mxu0 0.0
        %1192 = vmatpush1.msra.mxu0 0.0
        %1193 = vmatprep.subr.mxu0 0.0
        %1194 = vmatpush1.msra.mxu0 0.0
        %1195 = vmatprep.subr.mxu0 0.0
        %1196 = vmatpush1.msra.mxu0 0.0
        %1197 = vmatprep.subr.mxu0 0.0
        %1198 = vmatpush1.msra.mxu0 0.0
        %1199 = vmatprep.subr.mxu0 0.0
        %1200 = vmatpush1.msra.mxu0 0.0
        %1201 = vmatprep.subr.mxu0 0.0
        %1202 = vmatpush1.msra.mxu0 0.0
        %1203 = vmatprep.subr.mxu0 0.0
        %1204 = vmatpush1.msra.mxu0 0.0
        %1205 = vmatprep.subr.mxu0 0.0
        %1206 = vmatpush1.msra.mxu0 0.0
        %1207 = vmatprep.subr.mxu0 0.0
        %1208 = vmatpush1.msra.mxu0 0.0
        %1209 = vmatprep.subr.mxu0 0.0
        %1210 = vmatpush1.msra.mxu0 0.0
        %1211 = vmatprep.subr.mxu0 0.0
        %1212 = vmatpush1.msra.mxu0 0.0
        %1213 = vmatprep.subr.mxu0 0.0
        %1214 = vmatpush1.msra.mxu0 0.0
        %1215 = vmatprep.subr.mxu0 0.0
        %1216 = vmatpush1.msra.mxu0 0.0
        %1217 = vmatprep.subr.mxu0 0.0
        %1218 = vmatpush1.msra.mxu0 0.0
        %1219 = vmatprep.subr.mxu0 0.0
        %1220 = vmatpush1.msra.mxu0 0.0
        %1221 = vmatprep.subr.mxu0 0.0
        %1222 = vmatpush1.msra.mxu0 0.0
        %1223 = vmatprep.subr.mxu0 0.0
        %1224 = vmatpush1.msra.mxu0 0.0
        %1225 = vmatprep.subr.mxu0 0.0
        %1226 = vmatpush1.msra.mxu0 0.0
        %1227 = vmatprep.subr.mxu0 0.0
        %1228 = vmatpush1.msra.mxu0 0.0
        %1229 = vmatprep.subr.mxu0 0.0
        %1230 = vmatpush1.msra.mxu0 0.0
        %1231 = vmatprep.subr.mxu0 0.0
        %1232 = vmatpush1.msra.mxu0 0.0
        %1233 = vmatprep.subr.mxu0 0.0
        %1234 = vmatpush1.msra.mxu0 0.0
        %1235 = vmatprep.subr.mxu0 0.0
        %1236 = vmatpush1.msra.mxu0 0.0
        %1237 = vmatprep.subr.mxu0 0.0
        %1238 = vmatpush1.msra.mxu0 0.0
        %1239 = vmatprep.subr.mxu0 0.0
        %1240 = vmatpush1.msra.mxu0 0.0
        %1241 = vmatprep.mubr.f32.mxu0 0.0
        %1242 = vmatmul.mubr.f32.gmra.mrb[0].mxu0 %v1172
        %v1243 = vpop.f32.mrb[0].mxu0
        %v1244 = vadd.f32 0.0, %v1243
        %v1245 = vpop.f32.mrb[0].mxu0
        %1246 = vmatprep.mubr.f32.mxu0 0.0
        %1247 = vmatmul.mubr.f32.gmra.mrb[0].mxu0 %v1175
        %v1248 = vpop.f32.mrb[0].mxu0
        %v1249 = vadd.f32 0.0, %v1248
        %v1250 = vpop.f32.mrb[0].mxu0
        %1251 = vdwg.mxu0
        %v1252 = vrcp.pop %v1159
        %v1253 = vrcp.pop %v1162
        %v1254 = vmul.f32 %v1244, %v1252
        %v1255 = vmul.f32 %v1249, %v1253
        %1258 = vrot.lane.b32.xlu0 %v1254, 8
        %v1259 = vpop.permute.xlu0 %1258
        %1260 = vrot.lane.b32.xlu0 %v1255, 8
        %v1261 = vpop.permute.xlu0 %1260
        %vm1264 = vcmask 130112
        %1265 = vst.msk [vmem:[#allocation2] sm:$0xff] %vm1264, %v1259
        %1266 = vst.msk [vmem:[#allocation2 + $0x8] sm:$0xff] %vm1264, %v1261
        %1267 = vrot.lane.b32.xlu0 %v670, 112
        %v1268 = vpop.permute.xlu0 %1267
        %1269 = vrot.lane.b32.xlu0 %v675, 112
        %v1270 = vpop.permute.xlu0 %1269
        %1271 = vrot.lane.b32.xlu0 %v762, 112
        %v1272 = vpop.permute.xlu0 %1271
        %1273 = vrot.lane.b32.xlu0 %v767, 112
        %v1274 = vpop.permute.xlu0 %1273
        %v1275 = vsel %vm856, %v1268, 0
        %v1277 = vsel %vm856, %v1270, 0
        %v1279 = vsel %vm856, %v1272, 0
        %v1281 = vsel %vm856, %v1274, 0
        %1283 = vmatprep.subr.mxu0 0.0
        %1284 = vmatpush1.xpose.msra.mxu0 %v1279
        %1285 = vmatprep.subr.mxu0 0.0
        %1286 = vmatpush1.xpose.msra.mxu0 %v1281
        %1287 = vmatprep.subr.mxu0 0.0
        %1288 = vmatpush1.xpose.msra.mxu0 0.0
        %1289 = vmatprep.subr.mxu0 0.0
        %1290 = vmatpush1.xpose.msra.mxu0 0.0
        %1291 = vmatprep.subr.mxu0 0.0
        %1292 = vmatpush1.xpose.msra.mxu0 0.0
        %1293 = vmatprep.subr.mxu0 0.0
        %1294 = vmatpush1.xpose.msra.mxu0 0.0
        %1295 = vmatprep.subr.mxu0 0.0
        %1296 = vmatpush1.xpose.msra.mxu0 0.0
        %1297 = vmatprep.subr.mxu0 0.0
        %1298 = vmatpush1.xpose.msra.mxu0 0.0
        %1299 = vmatprep.subr.mxu0 0.0
        %1300 = vmatpush1.xpose.msra.mxu0 0.0
        %1301 = vmatprep.subr.mxu0 0.0
        %1302 = vmatpush1.xpose.msra.mxu0 0.0
        %1303 = vmatprep.subr.mxu0 0.0
        %1304 = vmatpush1.xpose.msra.mxu0 0.0
        %1305 = vmatprep.subr.mxu0 0.0
        %1306 = vmatpush1.xpose.msra.mxu0 0.0
        %1307 = vmatprep.subr.mxu0 0.0
        %1308 = vmatpush1.xpose.msra.mxu0 0.0
        %1309 = vmatprep.subr.mxu0 0.0
        %1310 = vmatpush1.xpose.msra.mxu0 0.0
        %1311 = vmatprep.subr.mxu0 0.0
        %1312 = vmatpush1.xpose.msra.mxu0 0.0
        %1313 = vmatprep.subr.mxu0 0.0
        %1314 = vmatpush1.xpose.msra.mxu0 0.0
        %1315 = vmatprep.subr.mxu0 0.0
        %1316 = vmatpush1.xpose.msra.mxu0 0.0
        %1317 = vmatprep.subr.mxu0 0.0
        %1318 = vmatpush1.xpose.msra.mxu0 0.0
        %1319 = vmatprep.subr.mxu0 0.0
        %1320 = vmatpush1.xpose.msra.mxu0 0.0
        %1321 = vmatprep.subr.mxu0 0.0
        %1322 = vmatpush1.xpose.msra.mxu0 0.0
        %1323 = vmatprep.subr.mxu0 0.0
        %1324 = vmatpush1.xpose.msra.mxu0 0.0
        %1325 = vmatprep.subr.mxu0 0.0
        %1326 = vmatpush1.xpose.msra.mxu0 0.0
        %1327 = vmatprep.subr.mxu0 0.0
        %1328 = vmatpush1.xpose.msra.mxu0 0.0
        %1329 = vmatprep.subr.mxu0 0.0
        %1330 = vmatpush1.xpose.msra.mxu0 0.0
        %1331 = vmatprep.subr.mxu0 0.0
        %1332 = vmatpush1.xpose.msra.mxu0 0.0
        %1333 = vmatprep.subr.mxu0 0.0
        %1334 = vmatpush1.xpose.msra.mxu0 0.0
        %1335 = vmatprep.subr.mxu0 0.0
        %1336 = vmatpush1.xpose.msra.mxu0 0.0
        %1337 = vmatprep.subr.mxu0 0.0
        %1338 = vmatpush1.xpose.msra.mxu0 0.0
        %1339 = vmatprep.subr.mxu0 0.0
        %1340 = vmatpush1.xpose.msra.mxu0 0.0
        %1341 = vmatprep.subr.mxu0 0.0
        %1342 = vmatpush1.xpose.msra.mxu0 0.0
        %1343 = vmatprep.subr.mxu0 0.0
        %1344 = vmatpush1.xpose.msra.mxu0 0.0
        %1345 = vmatprep.subr.mxu0 0.0
        %1346 = vmatpush1.xpose.msra.mxu0 0.0
        %1347 = vmatprep.mubr.f32.mxu0 0.0
        %1348 = vmatmul.mubr.f32.gmra.mrb[0].mxu0 %v1275
        %v1349 = vpop.f32.mrb[0].mxu0
        %v1350 = vadd.f32 0.0, %v1349
        %v1351 = vpop.f32.mrb[0].mxu0
        %1352 = vmatprep.mubr.f32.mxu0 0.0
        %1353 = vmatmul.mubr.f32.gmra.mrb[0].mxu0 %v1277
        %v1354 = vpop.f32.mrb[0].mxu0
        %v1355 = vadd.f32 0.0, %v1354
        %v1356 = vpop.f32.mrb[0].mxu0
        %1357 = vdwg.mxu0
        %v1358 = vmul.f32 %v1350, 0.35355338
        %v1359 = vmul.f32 %v1355, 0.35355338
        %v1360 = vsel %vm946, %v1358, -inf
        %1361 = vmax.xlane.f32.xlu0 %v1360
        %v1362 = vpop.xlane.xlu0 %1361
        %v1363 = vsel %vm946, %v1359, -inf
        %1364 = vmax.xlane.f32.xlu0 %v1363
        %v1365 = vpop.xlane.xlu0 %1364
        %v1366 = vsub.f32 %v1358, %v1362
        %v1367 = vsub.f32 %v1359, %v1365
        %v1368 = vmul.f32 %v1366, 1.442695
        %v1369 = vpow.pop %v1368
        %v1370 = vmul.f32 %v1367, 1.442695
        %v1371 = vpow.pop %v1370
        %v1372 = vsel %vm946, %v1369, 0.0
        %1373 = vadd.xlane.f32.xlu0 %v1372
        %v1374 = vpop.xlane.xlu0 %1373
        %v1375 = vsel %vm946, %v1371, 0.0
        %1376 = vadd.xlane.f32.xlu0 %v1375
        %v1377 = vpop.xlane.xlu0 %1376
        %1378 = vrot.lane.b32.xlu0 %v848, 112
        %v1379 = vpop.permute.xlu0 %1378
        %1380 = vrot.lane.b32.xlu0 %v853, 112
        %v1381 = vpop.permute.xlu0 %1380
        %v1385 = vsel %vm946, %v1369, 0
        %v1388 = vsel %vm946, %v1371, 0
        %1390 = vmatprep.subr.mxu0 0.0
        %1391 = vmatpush1.msra.mxu0 %v1379
        %1392 = vmatprep.subr.mxu0 0.0
        %1393 = vmatpush1.msra.mxu0 %v1381
        %1394 = vmatprep.subr.mxu0 0.0
        %1395 = vmatpush1.msra.mxu0 0.0
        %1396 = vmatprep.subr.mxu0 0.0
        %1397 = vmatpush1.msra.mxu0 0.0
        %1398 = vmatprep.subr.mxu0 0.0
        %1399 = vmatpush1.msra.mxu0 0.0
        %1400 = vmatprep.subr.mxu0 0.0
        %1401 = vmatpush1.msra.mxu0 0.0
        %1402 = vmatprep.subr.mxu0 0.0
        %1403 = vmatpush1.msra.mxu0 0.0
        %1404 = vmatprep.subr.mxu0 0.0
        %1405 = vmatpush1.msra.mxu0 0.0
        %1406 = vmatprep.subr.mxu0 0.0
        %1407 = vmatpush1.msra.mxu0 0.0
        %1408 = vmatprep.subr.mxu0 0.0
        %1409 = vmatpush1.msra.mxu0 0.0
        %1410 = vmatprep.subr.mxu0 0.0
        %1411 = vmatpush1.msra.mxu0 0.0
        %1412 = vmatprep.subr.mxu0 0.0
        %1413 = vmatpush1.msra.mxu0 0.0
        %1414 = vmatprep.subr.mxu0 0.0
        %1415 = vmatpush1.msra.mxu0 0.0
        %1416 = vmatprep.subr.mxu0 0.0
        %1417 = vmatpush1.msra.mxu0 0.0
        %1418 = vmatprep.subr.mxu0 0.0
        %1419 = vmatpush1.msra.mxu0 0.0
        %1420 = vmatprep.subr.mxu0 0.0
        %1421 = vmatpush1.msra.mxu0 0.0
        %1422 = vmatprep.subr.mxu0 0.0
        %1423 = vmatpush1.msra.mxu0 0.0
        %1424 = vmatprep.subr.mxu0 0.0
        %1425 = vmatpush1.msra.mxu0 0.0
        %1426 = vmatprep.subr.mxu0 0.0
        %1427 = vmatpush1.msra.mxu0 0.0
        %1428 = vmatprep.subr.mxu0 0.0
        %1429 = vmatpush1.msra.mxu0 0.0
        %1430 = vmatprep.subr.mxu0 0.0
        %1431 = vmatpush1.msra.mxu0 0.0
        %1432 = vmatprep.subr.mxu0 0.0
        %1433 = vmatpush1.msra.mxu0 0.0
        %1434 = vmatprep.subr.mxu0 0.0
        %1435 = vmatpush1.msra.mxu0 0.0
        %1436 = vmatprep.subr.mxu0 0.0
        %1437 = vmatpush1.msra.mxu0 0.0
        %1438 = vmatprep.subr.mxu0 0.0
        %1439 = vmatpush1.msra.mxu0 0.0
        %1440 = vmatprep.subr.mxu0 0.0
        %1441 = vmatpush1.msra.mxu0 0.0
        %1442 = vmatprep.subr.mxu0 0.0
        %1443 = vmatpush1.msra.mxu0 0.0
        %1444 = vmatprep.subr.mxu0 0.0
        %1445 = vmatpush1.msra.mxu0 0.0
        %1446 = vmatprep.subr.mxu0 0.0
        %1447 = vmatpush1.msra.mxu0 0.0
        %1448 = vmatprep.subr.mxu0 0.0
        %1449 = vmatpush1.msra.mxu0 0.0
        %1450 = vmatprep.subr.mxu0 0.0
        %1451 = vmatpush1.msra.mxu0 0.0
        %1452 = vmatprep.subr.mxu0 0.0
        %1453 = vmatpush1.msra.mxu0 0.0
        %1454 = vmatprep.mubr.f32.mxu0 0.0
        %1455 = vmatmul.mubr.f32.gmra.mrb[0].mxu0 %v1385
        %v1456 = vpop.f32.mrb[0].mxu0
        %v1457 = vadd.f32 0.0, %v1456
        %v1458 = vpop.f32.mrb[0].mxu0
        %1459 = vmatprep.mubr.f32.mxu0 0.0
        %1460 = vmatmul.mubr.f32.gmra.mrb[0].mxu0 %v1388
        %v1461 = vpop.f32.mrb[0].mxu0
        %v1462 = vadd.f32 0.0, %v1461
        %v1463 = vpop.f32.mrb[0].mxu0
        %1464 = vdwg.mxu0
        %v1465 = vrcp.pop %v1374
        %v1466 = vrcp.pop %v1377
        %v1467 = vmul.f32 %v1457, %v1465
        %v1468 = vmul.f32 %v1462, %v1466
        %1471 = vrot.lane.b32.xlu0 %v1467, 16
        %v1472 = vpop.permute.xlu0 %1471
        %1473 = vrot.lane.b32.xlu0 %v1468, 16
        %v1474 = vpop.permute.xlu0 %1473
        %vm1477 = vcmask 195712
        %1478 = vst.msk [vmem:[#allocation2] sm:$0xff] %vm1477, %v1472
        %1479 = vst.msk [vmem:[#allocation2 + $0x8] sm:$0xff] %vm1477, %v1474
        %1480 = vrot.lane.b32.xlu0 %v670, 104
        %v1481 = vpop.permute.xlu0 %1480
        %1482 = vrot.lane.b32.xlu0 %v675, 104
        %v1483 = vpop.permute.xlu0 %1482
        %1484 = vrot.lane.b32.xlu0 %v762, 104
        %v1485 = vpop.permute.xlu0 %1484
        %1486 = vrot.lane.b32.xlu0 %v767, 104
        %v1487 = vpop.permute.xlu0 %1486
        %v1488 = vsel %vm856, %v1481, 0
        %v1490 = vsel %vm856, %v1483, 0
        %v1492 = vsel %vm856, %v1485, 0
        %v1494 = vsel %vm856, %v1487, 0
        %1496 = vmatprep.subr.mxu0 0.0
        %1497 = vmatpush1.xpose.msra.mxu0 %v1492
        %1498 = vmatprep.subr.mxu0 0.0
        %1499 = vmatpush1.xpose.msra.mxu0 %v1494
        %1500 = vmatprep.subr.mxu0 0.0
        %1501 = vmatpush1.xpose.msra.mxu0 0.0
        %1502 = vmatprep.subr.mxu0 0.0
        %1503 = vmatpush1.xpose.msra.mxu0 0.0
        %1504 = vmatprep.subr.mxu0 0.0
        %1505 = vmatpush1.xpose.msra.mxu0 0.0
        %1506 = vmatprep.subr.mxu0 0.0
        %1507 = vmatpush1.xpose.msra.mxu0 0.0
        %1508 = vmatprep.subr.mxu0 0.0
        %1509 = vmatpush1.xpose.msra.mxu0 0.0
        %1510 = vmatprep.subr.mxu0 0.0
        %1511 = vmatpush1.xpose.msra.mxu0 0.0
        %1512 = vmatprep.subr.mxu0 0.0
        %1513 = vmatpush1.xpose.msra.mxu0 0.0
        %1514 = vmatprep.subr.mxu0 0.0
        %1515 = vmatpush1.xpose.msra.mxu0 0.0
        %1516 = vmatprep.subr.mxu0 0.0
        %1517 = vmatpush1.xpose.msra.mxu0 0.0
        %1518 = vmatprep.subr.mxu0 0.0
        %1519 = vmatpush1.xpose.msra.mxu0 0.0
        %1520 = vmatprep.subr.mxu0 0.0
        %1521 = vmatpush1.xpose.msra.mxu0 0.0
        %1522 = vmatprep.subr.mxu0 0.0
        %1523 = vmatpush1.xpose.msra.mxu0 0.0
        %1524 = vmatprep.subr.mxu0 0.0
        %1525 = vmatpush1.xpose.msra.mxu0 0.0
        %1526 = vmatprep.subr.mxu0 0.0
        %1527 = vmatpush1.xpose.msra.mxu0 0.0
        %1528 = vmatprep.subr.mxu0 0.0
        %1529 = vmatpush1.xpose.msra.mxu0 0.0
        %1530 = vmatprep.subr.mxu0 0.0
        %1531 = vmatpush1.xpose.msra.mxu0 0.0
        %1532 = vmatprep.subr.mxu0 0.0
        %1533 = vmatpush1.xpose.msra.mxu0 0.0
        %1534 = vmatprep.subr.mxu0 0.0
        %1535 = vmatpush1.xpose.msra.mxu0 0.0
        %1536 = vmatprep.subr.mxu0 0.0
        %1537 = vmatpush1.xpose.msra.mxu0 0.0
        %1538 = vmatprep.subr.mxu0 0.0
        %1539 = vmatpush1.xpose.msra.mxu0 0.0
        %1540 = vmatprep.subr.mxu0 0.0
        %1541 = vmatpush1.xpose.msra.mxu0 0.0
        %1542 = vmatprep.subr.mxu0 0.0
        %1543 = vmatpush1.xpose.msra.mxu0 0.0
        %1544 = vmatprep.subr.mxu0 0.0
        %1545 = vmatpush1.xpose.msra.mxu0 0.0
        %1546 = vmatprep.subr.mxu0 0.0
        %1547 = vmatpush1.xpose.msra.mxu0 0.0
        %1548 = vmatprep.subr.mxu0 0.0
        %1549 = vmatpush1.xpose.msra.mxu0 0.0
        %1550 = vmatprep.subr.mxu0 0.0
        %1551 = vmatpush1.xpose.msra.mxu0 0.0
        %1552 = vmatprep.subr.mxu0 0.0
        %1553 = vmatpush1.xpose.msra.mxu0 0.0
        %1554 = vmatprep.subr.mxu0 0.0
        %1555 = vmatpush1.xpose.msra.mxu0 0.0
        %1556 = vmatprep.subr.mxu0 0.0
        %1557 = vmatpush1.xpose.msra.mxu0 0.0
        %1558 = vmatprep.subr.mxu0 0.0
        %1559 = vmatpush1.xpose.msra.mxu0 0.0
        %1560 = vmatprep.mubr.f32.mxu0 0.0
        %1561 = vmatmul.mubr.f32.gmra.mrb[0].mxu0 %v1488
        %v1562 = vpop.f32.mrb[0].mxu0
        %v1563 = vadd.f32 0.0, %v1562
        %v1564 = vpop.f32.mrb[0].mxu0
        %1565 = vmatprep.mubr.f32.mxu0 0.0
        %1566 = vmatmul.mubr.f32.gmra.mrb[0].mxu0 %v1490
        %v1567 = vpop.f32.mrb[0].mxu0
        %v1568 = vadd.f32 0.0, %v1567
        %v1569 = vpop.f32.mrb[0].mxu0
        %1570 = vdwg.mxu0
        %v1571 = vmul.f32 %v1563, 0.35355338
        %v1572 = vmul.f32 %v1568, 0.35355338
        %v1573 = vsel %vm946, %v1571, -inf
        %1574 = vmax.xlane.f32.xlu0 %v1573
        %v1575 = vpop.xlane.xlu0 %1574
        %v1576 = vsel %vm946, %v1572, -inf
        %1577 = vmax.xlane.f32.xlu0 %v1576
        %v1578 = vpop.xlane.xlu0 %1577
        %v1579 = vsub.f32 %v1571, %v1575
        %v1580 = vsub.f32 %v1572, %v1578
        %v1581 = vmul.f32 %v1579, 1.442695
        %v1582 = vpow.pop %v1581
        %v1583 = vmul.f32 %v1580, 1.442695
        %v1584 = vpow.pop %v1583
        %v1585 = vsel %vm946, %v1582, 0.0
        %1586 = vadd.xlane.f32.xlu0 %v1585
        %v1587 = vpop.xlane.xlu0 %1586
        %v1588 = vsel %vm946, %v1584, 0.0
        %1589 = vadd.xlane.f32.xlu0 %v1588
        %v1590 = vpop.xlane.xlu0 %1589
        %1591 = vrot.lane.b32.xlu0 %v848, 104
        %v1592 = vpop.permute.xlu0 %1591
        %1593 = vrot.lane.b32.xlu0 %v853, 104
        %v1594 = vpop.permute.xlu0 %1593
        %v1598 = vsel %vm946, %v1582, 0
        %v1601 = vsel %vm946, %v1584, 0
        %1603 = vmatprep.subr.mxu0 0.0
        %1604 = vmatpush1.msra.mxu0 %v1592
        %1605 = vmatprep.subr.mxu0 0.0
        %1606 = vmatpush1.msra.mxu0 %v1594
        %1607 = vmatprep.subr.mxu0 0.0
        %1608 = vmatpush1.msra.mxu0 0.0
        %1609 = vmatprep.subr.mxu0 0.0
        %1610 = vmatpush1.msra.mxu0 0.0
        %1611 = vmatprep.subr.mxu0 0.0
        %1612 = vmatpush1.msra.mxu0 0.0
        %1613 = vmatprep.subr.mxu0 0.0
        %1614 = vmatpush1.msra.mxu0 0.0
        %1615 = vmatprep.subr.mxu0 0.0
        %1616 = vmatpush1.msra.mxu0 0.0
        %1617 = vmatprep.subr.mxu0 0.0
        %1618 = vmatpush1.msra.mxu0 0.0
        %1619 = vmatprep.subr.mxu0 0.0
        %1620 = vmatpush1.msra.mxu0 0.0
        %1621 = vmatprep.subr.mxu0 0.0
        %1622 = vmatpush1.msra.mxu0 0.0
        %1623 = vmatprep.subr.mxu0 0.0
        %1624 = vmatpush1.msra.mxu0 0.0
        %1625 = vmatprep.subr.mxu0 0.0
        %1626 = vmatpush1.msra.mxu0 0.0
        %1627 = vmatprep.subr.mxu0 0.0
        %1628 = vmatpush1.msra.mxu0 0.0
        %1629 = vmatprep.subr.mxu0 0.0
        %1630 = vmatpush1.msra.mxu0 0.0
        %1631 = vmatprep.subr.mxu0 0.0
        %1632 = vmatpush1.msra.mxu0 0.0
        %1633 = vmatprep.subr.mxu0 0.0
        %1634 = vmatpush1.msra.mxu0 0.0
        %1635 = vmatprep.subr.mxu0 0.0
        %1636 = vmatpush1.msra.mxu0 0.0
        %1637 = vmatprep.subr.mxu0 0.0
        %1638 = vmatpush1.msra.mxu0 0.0
        %1639 = vmatprep.subr.mxu0 0.0
        %1640 = vmatpush1.msra.mxu0 0.0
        %1641 = vmatprep.subr.mxu0 0.0
        %1642 = vmatpush1.msra.mxu0 0.0
        %1643 = vmatprep.subr.mxu0 0.0
        %1644 = vmatpush1.msra.mxu0 0.0
        %1645 = vmatprep.subr.mxu0 0.0
        %1646 = vmatpush1.msra.mxu0 0.0
        %1647 = vmatprep.subr.mxu0 0.0
        %1648 = vmatpush1.msra.mxu0 0.0
        %1649 = vmatprep.subr.mxu0 0.0
        %1650 = vmatpush1.msra.mxu0 0.0
        %1651 = vmatprep.subr.mxu0 0.0
        %1652 = vmatpush1.msra.mxu0 0.0
        %1653 = vmatprep.subr.mxu0 0.0
        %1654 = vmatpush1.msra.mxu0 0.0
        %1655 = vmatprep.subr.mxu0 0.0
        %1656 = vmatpush1.msra.mxu0 0.0
        %1657 = vmatprep.subr.mxu0 0.0
        %1658 = vmatpush1.msra.mxu0 0.0
        %1659 = vmatprep.subr.mxu0 0.0
        %1660 = vmatpush1.msra.mxu0 0.0
        %1661 = vmatprep.subr.mxu0 0.0
        %1662 = vmatpush1.msra.mxu0 0.0
        %1663 = vmatprep.subr.mxu0 0.0
        %1664 = vmatpush1.msra.mxu0 0.0
        %1665 = vmatprep.subr.mxu0 0.0
        %1666 = vmatpush1.msra.mxu0 0.0
        %1667 = vmatprep.mubr.f32.mxu0 0.0
        %1668 = vmatmul.mubr.f32.gmra.mrb[0].mxu0 %v1598
        %v1669 = vpop.f32.mrb[0].mxu0
        %v1670 = vadd.f32 0.0, %v1669
        %v1671 = vpop.f32.mrb[0].mxu0
        %1672 = vmatprep.mubr.f32.mxu0 0.0
        %1673 = vmatmul.mubr.f32.gmra.mrb[0].mxu0 %v1601
        %v1674 = vpop.f32.mrb[0].mxu0
        %v1675 = vadd.f32 0.0, %v1674
        %v1676 = vpop.f32.mrb[0].mxu0
        %1677 = vdwg.mxu0
        %v1678 = vrcp.pop %v1587
        %v1679 = vrcp.pop %v1590
        %v1680 = vmul.f32 %v1670, %v1678
        %v1681 = vmul.f32 %v1675, %v1679
        %1684 = vrot.lane.b32.xlu0 %v1680, 24
        %v1685 = vpop.permute.xlu0 %1684
        %1686 = vrot.lane.b32.xlu0 %v1681, 24
        %v1687 = vpop.permute.xlu0 %1686
        %vm1690 = vcmask 261312
        %1691 = vst.msk [vmem:[#allocation2] sm:$0xff] %vm1690, %v1685
        %1692 = vst.msk [vmem:[#allocation2 + $0x8] sm:$0xff] %vm1690, %v1687
        %v1693 = vld [vmem:[#allocation2] sm:$0xff]
        %v1694 = vld [vmem:[#allocation2 + $0x8] sm:$0xff]
        %v1695 = vadd.f32 %v577, %v1693
        %v1696 = vadd.f32 %v578, %v1694
        %v1697 = vld [vmem:[%s10] sm:$0xff]
        %v1698 = vld [vmem:[%s10 + $0x8] sm:$0xff]
        %v1699 = vld [vmem:[%s10 + $0x10] sm:$0xff]
        %v1700 = vld [vmem:[%s10 + $0x18] sm:$0xff]
        %v1701 = vld [vmem:[%s11] sm:$0x1]
        %v1703 = vlaneseq
        %v1704 = vshrl.u32 %v1703, 7
        %v1705 = vsub.s32 0, %v1704
        %v1706 = vrot.slane %v1701, %v1705
        %v1709 = vsel %vm596, %v1695, 0
        %v1712 = vsel %vm596, %v1696, 0
        %1714 = vmatprep.subr.mxu0 0.0
        %1715 = vmatpush1.msra.mxu0 %v1697
        %1716 = vmatprep.subr.mxu0 0.0
        %1717 = vmatpush1.msra.mxu0 %v1698
        %1718 = vmatprep.subr.mxu0 0.0
        %1719 = vmatpush1.msra.mxu0 %v1699
        %1720 = vmatprep.subr.mxu0 0.0
        %1721 = vmatpush1.msra.mxu0 %v1700
        %1722 = vmatprep.subr.mxu0 0.0
        %1723 = vmatpush1.msra.mxu0 0.0
        %1724 = vmatprep.subr.mxu0 0.0
        %1725 = vmatpush1.msra.mxu0 0.0
        %1726 = vmatprep.subr.mxu0 0.0
        %1727 = vmatpush1.msra.mxu0 0.0
        %1728 = vmatprep.subr.mxu0 0.0
        %1729 = vmatpush1.msra.mxu0 0.0
        %1730 = vmatprep.subr.mxu0 0.0
        %1731 = vmatpush1.msra.mxu0 0.0
        %1732 = vmatprep.subr.mxu0 0.0
        %1733 = vmatpush1.msra.mxu0 0.0
        %1734 = vmatprep.subr.mxu0 0.0
        %1735 = vmatpush1.msra.mxu0 0.0
        %1736 = vmatprep.subr.mxu0 0.0
        %1737 = vmatpush1.msra.mxu0 0.0
        %1738 = vmatprep.subr.mxu0 0.0
        %1739 = vmatpush1.msra.mxu0 0.0
        %1740 = vmatprep.subr.mxu0 0.0
        %1741 = vmatpush1.msra.mxu0 0.0
        %1742 = vmatprep.subr.mxu0 0.0
        %1743 = vmatpush1.msra.mxu0 0.0
        %1744 = vmatprep.subr.mxu0 0.0
        %1745 = vmatpush1.msra.mxu0 0.0
        %1746 = vmatprep.subr.mxu0 0.0
        %1747 = vmatpush1.msra.mxu0 0.0
        %1748 = vmatprep.subr.mxu0 0.0
        %1749 = vmatpush1.msra.mxu0 0.0
        %1750 = vmatprep.subr.mxu0 0.0
        %1751 = vmatpush1.msra.mxu0 0.0
        %1752 = vmatprep.subr.mxu0 0.0
        %1753 = vmatpush1.msra.mxu0 0.0
        %1754 = vmatprep.subr.mxu0 0.0
        %1755 = vmatpush1.msra.mxu0 0.0
        %1756 = vmatprep.subr.mxu0 0.0
        %1757 = vmatpush1.msra.mxu0 0.0
        %1758 = vmatprep.subr.mxu0 0.0
        %1759 = vmatpush1.msra.mxu0 0.0
        %1760 = vmatprep.subr.mxu0 0.0
        %1761 = vmatpush1.msra.mxu0 0.0
        %1762 = vmatprep.subr.mxu0 0.0
        %1763 = vmatpush1.msra.mxu0 0.0
        %1764 = vmatprep.subr.mxu0 0.0
        %1765 = vmatpush1.msra.mxu0 0.0
        %1766 = vmatprep.subr.mxu0 0.0
        %1767 = vmatpush1.msra.mxu0 0.0
        %1768 = vmatprep.subr.mxu0 0.0
        %1769 = vmatpush1.msra.mxu0 0.0
        %1770 = vmatprep.subr.mxu0 0.0
        %1771 = vmatpush1.msra.mxu0 0.0
        %1772 = vmatprep.subr.mxu0 0.0
        %1773 = vmatpush1.msra.mxu0 0.0
        %1774 = vmatprep.subr.mxu0 0.0
        %1775 = vmatpush1.msra.mxu0 0.0
        %1776 = vmatprep.subr.mxu0 0.0
        %1777 = vmatpush1.msra.mxu0 0.0
        %1778 = vmatprep.mubr.f32.mxu0 0.0
        %1779 = vmatmul.mubr.f32.gmra.mrb[0].mxu0 %v1709
        %v1780 = vpop.f32.mrb[0].mxu0
        %v1781 = vadd.f32 %v1706, %v1780
        %v1782 = vpop.f32.mrb[0].mxu0
        %1783 = vmatprep.mubr.f32.mxu0 0.0
        %1784 = vmatmul.mubr.f32.gmra.mrb[0].mxu0 %v1712
        %v1785 = vpop.f32.mrb[0].mxu0
        %v1786 = vadd.f32 %v1706, %v1785
        %v1787 = vpop.f32.mrb[0].mxu0
        %1788 = vdwg.mxu0
        %1789 = vst.msk [vmem:[%s569] sm:$0xff] %vm596, %v1781
        %1790 = vst.msk [vmem:[%s569 + $0x8] sm:$0xff] %vm596, %v1786
        %s1791 = sand.u32 %s325, 1
        %s1792 = scalar_lea.sflag [#allocation5], %s1791
        %s1793 = sand.u32 %s325, 1
        %s1794 = smul.addr %s1793, 16
        %s1795 = scalar_lea.vmem [#allocation15], %s1794
        // Predicated region
        $region97: #{tpu_custom_call.1} parent=67 // pred_check
          %p1796 = pneg %p335
        $region98: #{tpu_custom_call.1} parent=67 // pred_check_branch
          %1798 = sbr.rel (%p1796) target = $region100
        $region99: #{tpu_custom_call.1} parent=67 // pred_region
          %s1799 = smul.u32 2, %s39
          %s1801 = ssub.s32 256, 256
          %1802 = vsyncadd %s1792, %s1801
          %s1803 = smul.addr %s38, 2
          %s1804 = sadd.s32 %s1799, %s1803
          %s1805 = smul.addr %s1804, 128
          %s1806 = scalar_lea.hbm %s12, %s1805
          %s1807 = sshll.u32 %s1795, 4
          %s1808 = int_to_ptr.vmem [resolvable:$true] %s1807
          %1813 = dma.vmem_to_hbm [thread:$0]  %s1808, 256, %s1806, %s1792, 128, 128, 8
        $region100: #{tpu_custom_call.1} parent=67 // pred_fallthru
          _
      $region68: #{tpu_custom_call.1} parent=5 // pred_fallthru
        _
      %p1814 = scmp.le.s32.totalorder 2, %s29
      // Predicated region
      $region101: #{tpu_custom_call.1} parent=5 // pred_check
        %p1815 = pneg %p1814
      $region102: #{tpu_custom_call.1} parent=5 // pred_check_branch
        %1817 = sbr.rel (%p1815) target = $region104
      $region103: #{tpu_custom_call.1} parent=5 // pred_region
        %s1818 = ssub.s32 %s29, 2
        // Predicated region
        $region105: #{tpu_custom_call.1} parent=103 // pred_check
          %p1819 = pneg %p341
        $region106: #{tpu_custom_call.1} parent=103 // pred_check_branch
          %1821 = sbr.rel (%p1819) target = $region108
        $region107: #{tpu_custom_call.1} parent=103 // pred_region
          %s1822 = sand.u32 %s326, 1
          %s1823 = scalar_lea.sflag [#allocation5], %s1822
          %s1824 = sand.u32 %s326, 1
          %s1825 = smul.addr %s1824, 16
          %s1826 = scalar_lea.vmem [#allocation15], %s1825
          %1827 = dma.done %s1823, 256
        $region108: #{tpu_custom_call.1} parent=103 // pred_fallthru
          _
      $region104: #{tpu_custom_call.1} parent=5 // pred_fallthru
        _
    $region6: #{tpu_custom_call.1} parent=1 // loop_footer
      %s33 = sadd.s32 1, %s29
    $region7: #{tpu_custom_call.1} parent=1 // loop_footer_branch
      %28 = sbr.rel target = $region3
    $region8: #{tpu_custom_call.1} parent=1 // loop_exit
      _
    %1828 = vsyncpa [#allocation4], 1
    %s1829 = scalar_lea.sflag [#allocation4], 1
    %1830 = vsyncpa %s1829, 1
    %1831 = vsyncpa [#allocation7], 1
    %s1832 = scalar_lea.sflag [#allocation7], 1
    %1833 = vsyncpa %s1832, 1
    %1834 = vsyncpa [#allocation10], 1
    %1835 = vsyncpa [#allocation13], 1
    %1836 = vsyncpa [#allocation5], 1
    %s1837 = scalar_lea.sflag [#allocation5], 1
    %1838 = vsyncpa %s1837, 1

</llo_original>
